<compile_context>
chip_gen: v6e
topology: v6e:2x2x1
jax: 0.10.0
libtpu: 0.0.40
codegen_flags: <defaults>
</compile_context>

<pallas_src>
import functools

import jax
import jax.numpy as jnp
import numpy as np
from jax.experimental import pallas as pl
from jax.experimental.pallas import tpu as pltpu


def _stack_kernel(x0_ref, wih_ref, whh_f_ref, whh_b_ref, b_ref,
                  out_ref, x_scr, gbuf, *, S, H, unroll):
    """One grid step == one BiLSTM layer (grid axis = depth, sequential).

    x0_ref   : (S, D)   f32   initial-transform output (seeds x_scr at n == 0)
    wih_ref  : (D, 8H)  bf16  [w_ih_fwd | w_ih_bwd] of current layer ([i f o g])
    whh_f_ref: (H, 4H)  bf16  recurrent weight, forward direction
    whh_b_ref: (H, 4H)  bf16  recurrent weight, backward direction
    b_ref    : (1, 8H)  f32   [b_fwd | b_bwd] with b = b_ih + b_hh
    out_ref  : (S, D)   f32   this layer's output block (D = 2H)
    x_scr    : (S, D)   f32   layer input / residual carried across layers
    gbuf     : (S, 8H)  f32   input-gate precompute for BOTH directions
    """
    f32 = jnp.float32
    bf16 = jnp.bfloat16
    n = pl.program_id(0)
    H3, H4 = 3 * H, 4 * H

    # seed the residual carry with x0 on the first layer only
    @pl.when(n == 0)
    def _():
        x_scr[...] = x0_ref[...]

    # ---- both directions' input gates in ONE matmul: (S,D)@(D,8H) ----
    # TODO(synk): time-chunk this precompute (double-buffered (Tc,8H) chunks
    # interleaved with the recurrence) to shrink the largest scratch on v7x.
    gbuf[...] = jnp.dot(x_scr[...].astype(bf16), wih_ref[...],
                        preferred_element_type=f32) + b_ref[...]

    # hoist the recurrent weights out of the time loop (loaded once per layer)
    # TODO(synk): pltpu.matmul_push_rhs could keep them resident in MXU weight
    # registers across all S steps.
    whh_f = whh_f_ref[...]                                    # (H, 4H) bf16
    whh_b = whh_b_ref[...]                                    # (H, 4H) bf16

    # ---- per-direction recurrence, both chains interleaved in one S-step loop
    # gate column order per direction: [i | f | o | g]
    def step(t, carry):
        hf, cf, hb, cb = carry                                # each (1, H) f32
        tb = S - 1 - t
        gf = gbuf[pl.ds(t, 1), 0:H4] + jnp.dot(
            hf.astype(bf16), whh_f, preferred_element_type=f32)      # (1, 4H)
        gb = gbuf[pl.ds(tb, 1), H4:2 * H4] + jnp.dot(
            hb.astype(bf16), whh_b, preferred_element_type=f32)      # (1, 4H)
        sf = jax.nn.sigmoid(gf[:, 0:H3])                      # i, f, o fused
        sb = jax.nn.sigmoid(gb[:, 0:H3])
        ggf = jnp.tanh(gf[:, H3:H4])
        ggb = jnp.tanh(gb[:, H3:H4])
        cf = sf[:, H:2 * H] * cf + sf[:, 0:H] * ggf
        cb = sb[:, H:2 * H] * cb + sb[:, 0:H] * ggb
        hf = sf[:, 2 * H:H3] * jnp.tanh(cf)
        hb = sb[:, 2 * H:H3] * jnp.tanh(cb)
        # write hidden rows straight into the output block (no hf/hb scratch)
        # TODO(synk): batch 8 rows per flush for sublane-dense stores (v5e vst).
        out_ref[pl.ds(t, 1), 0:H] = hf
        out_ref[pl.ds(tb, 1), H:2 * H] = hb
        return (hf, cf, hb, cb)

    z = jnp.zeros((1, H), f32)
    jax.lax.fori_loop(0, S, step, (z, z, z, z), unroll=unroll)

    # ---- residual_add = 1: single in-place pass ----
    x_new = out_ref[...] + x_scr[...]
    out_ref[...] = x_new
    x_scr[...] = x_new
    # TODO(synk): on v7x run the two directions on separate TensorCores via
    # pl.core_map (exchange residual lane-halves at each layer boundary).


def vardrop_lstm_stack(x, w_init, wih, whh_f, whh_b, b):
    """Pallas wrapper. Weights use the packed/reordered layout from pack_params.

    x      : (S, D_in)         f32
    w_init : (D_in, D)         initial linear weight (pre-transposed)
    wih    : (depth, D, 8H)    [w_ih_fwd | w_ih_bwd], gate cols [i f o g]
    whh_f  : (depth, H, 4H)    recurrent weight fwd, gate cols [i f o g]
    whh_b  : (depth, H, 4H)    recurrent weight bwd, gate cols [i f o g]
    b      : (depth, 1, 8H)    [b_fwd | b_bwd] with b = b_ih + b_hh
    Returns (depth+1, S, D) stacked layer outputs [x0, x1, ..., x_depth].
    """
    S, D_in = x.shape
    depth, D, eight_h = wih.shape
    H = eight_h // 8
    assert D == 2 * H

    f32, bf16 = jnp.float32, jnp.bfloat16
    x = x.astype(f32)
    wih = wih.astype(bf16)          # matmul operands in bf16, f32 accumulate
    whh_f = whh_f.astype(bf16)
    whh_b = whh_b.astype(bf16)
    b = b.astype(f32)

    # initial transform hoisted out of the kernel (plain XLA matmul)
    x0 = jnp.dot(x.astype(bf16), w_init.astype(bf16), preferred_element_type=f32)

    if S % 8 == 0:
        unroll = 8
    elif S % 4 == 0:
        unroll = 4
    elif S % 2 == 0:
        unroll = 2
    else:
        unroll = 1
    kernel = functools.partial(_stack_kernel, S=S, H=H, unroll=unroll)

    def nbytes(shape, dt):
        return int(np.prod(shape)) * jnp.dtype(dt).itemsize

    # resident VMEM: double-buffered blocks + scratch (bias sublane-padded to 8)
    est = (2 * nbytes((S, D), f32)                 # x0 block
           + 2 * nbytes((D, 8 * H), bf16)          # per-layer w_ih
           + 4 * nbytes((H, 4 * H), bf16)          # per-layer w_hh fwd+bwd
           + 2 * nbytes((8, 8 * H), f32)           # per-layer bias (padded)
           + 2 * nbytes((S, D), f32)               # per-layer output block
           + nbytes((S, D), f32)                   # x_scr
           + nbytes((S, 8 * H), f32))              # gbuf
    try:
        info = pltpu.get_tpu_info()
        cap = int(getattr(info, "vmem_capacity_bytes", 64 * 1024 * 1024))
    except Exception:
        cap = 64 * 1024 * 1024
    vmem_limit = int(min(0.9 * cap, max(2 * est, 8 * 1024 * 1024)))

    grid_spec = pltpu.PrefetchScalarGridSpec(
        num_scalar_prefetch=0,
        grid=(depth,),
        in_specs=[
            pl.BlockSpec((S, D), lambda n: (0, 0)),                # x0 (resident)
            pl.BlockSpec((None, D, 8 * H), lambda n: (n, 0, 0)),   # per-layer w_ih
            pl.BlockSpec((None, H, 4 * H), lambda n: (n, 0, 0)),   # per-layer w_hh fwd
            pl.BlockSpec((None, H, 4 * H), lambda n: (n, 0, 0)),   # per-layer w_hh bwd
            pl.BlockSpec((None, 1, 8 * H), lambda n: (n, 0, 0)),   # per-layer bias
        ],
        out_specs=pl.BlockSpec((None, S, D), lambda n: (n, 0, 0)), # per-layer output
        scratch_shapes=[
            pltpu.VMEM((S, D), f32),          # residual / layer-input carry
            pltpu.VMEM((S, 8 * H), f32),      # input-gate precompute (both dirs)
        ],
    )

    layers = pl.pallas_call(
        kernel,
        out_shape=jax.ShapeDtypeStruct((depth, S, D), f32),
        grid_spec=grid_spec,
        compiler_params=pltpu.CompilerParams(
            dimension_semantics=("arbitrary",),
            vmem_limit_bytes=vmem_limit),
    )(x0, wih, whh_f, whh_b, b)

    return jnp.concatenate([x0[None], layers], axis=0)


# ------------------------- parameter construction ---------------------------
def _uniform(key, shape, fan_sum):
    # Mirrors VardropLSTMStack.initialize_parameters: U(-m, m), m = sqrt(6/sum(shape))
    m = (6.0 / fan_sum) ** 0.5
    return jax.random.uniform(key, shape, jnp.float32, minval=-m, maxval=m)


def make_params(key, depth, dim_in, dim_stack):
    """Per-direction params in torch gate order (i,f,g,o), pre-transposed."""
    H = dim_stack // 2
    keys = iter(jax.random.split(key, 1 + depth * 8))
    w_init = _uniform(next(keys), (dim_in, dim_stack), dim_in + dim_stack)
    wih_f, whh_f, b_f, wih_b, whh_b, b_b = [], [], [], [], [], []
    for _ in range(depth):
        # torch shapes: weight_ih (4H, D), weight_hh (4H, H), bias_ih/bias_hh (4H,)
        wih_f.append(_uniform(next(keys), (dim_stack, 4 * H), 4 * H + dim_stack))
        whh_f.append(_uniform(next(keys), (H, 4 * H), 4 * H + H))
        b_f.append(_uniform(next(keys), (1, 4 * H), 4 * H)
                   + _uniform(next(keys), (1, 4 * H), 4 * H))
        wih_b.append(_uniform(next(keys), (dim_stack, 4 * H), 4 * H + dim_stack))
        whh_b.append(_uniform(next(keys), (H, 4 * H), 4 * H + H))
        b_b.append(_uniform(next(keys), (1, 4 * H), 4 * H)
                   + _uniform(next(keys), (1, 4 * H), 4 * H))
    stack = lambda xs: jnp.stack(xs, axis=0)
    return (w_init, stack(wih_f), stack(whh_f), stack(b_f),
            stack(wih_b), stack(whh_b), stack(b_b))


def _reorder_gates(w, H):
    """torch gate order i,f,g,o -> kernel order i,f,o,g along last axis (4H)."""
    return jnp.concatenate([w[..., 0:2 * H], w[..., 3 * H:4 * H],
                            w[..., 2 * H:3 * H]], axis=-1)


def pack_params(w_init, wih_f, whh_f, b_f, wih_b, whh_b, b_b):
    """Pack fwd/bwd along the gate axis and reorder gate columns to [i f o g]."""
    H = whh_f.shape[1]
    wih = jnp.concatenate([_reorder_gates(wih_f, H), _reorder_gates(wih_b, H)],
                          axis=-1)                                 # (depth, D, 8H)
    bias = jnp.concatenate([_reorder_gates(b_f, H), _reorder_gates(b_b, H)],
                           axis=-1)                                # (depth, 1, 8H)
    return (w_init, wih, _reorder_gates(whh_f, H), _reorder_gates(whh_b, H), bias)


# ------------------------- pure-JAX reference -------------------------------
# Uses the same bf16 matmul operands / f32 accumulation as the kernel so the
# correctness check stays tight. Torch gate order (i, f, g, o).
def _lstm_dir_ref(x, w_ih, w_hh, b, reverse, mm_dtype):
    H = w_hh.shape[0]
    f32 = jnp.float32
    w_ih = w_ih.astype(mm_dtype)
    w_hh = w_hh.astype(mm_dtype)
    G = jnp.dot(x.astype(mm_dtype), w_ih, preferred_element_type=f32) + b[0]
    if reverse:
        G = G[::-1]

    def step(carry, g):
        h, c = carry
        g = g[None, :] + jnp.dot(h.astype(mm_dtype), w_hh, preferred_element_type=f32)
        i_g = jax.nn.sigmoid(g[:, 0 * H:1 * H])
        f_g = jax.nn.sigmoid(g[:, 1 * H:2 * H])
        g_g = jnp.tanh(g[:, 2 * H:3 * H])
        o_g = jax.nn.sigmoid(g[:, 3 * H:4 * H])
        c = f_g * c + i_g * g_g
        h = o_g * jnp.tanh(c)
        return (h, c), h[0]

    init = (jnp.zeros((1, H), f32), jnp.zeros((1, H), f32))
    _, hs = jax.lax.scan(step, init, G)
    if reverse:
        hs = hs[::-1]
    return hs                                              # (S, H)


def vardrop_lstm_stack_ref(x, w_init, wih_f, whh_f, b_f, wih_b, whh_b, b_b,
                           mm_dtype=jnp.bfloat16):
    depth = wih_f.shape[0]
    xc = jnp.dot(x.astype(mm_dtype), w_init.astype(mm_dtype),
                 preferred_element_type=jnp.float32)
    outs = [xc]
    for n in range(depth):
        hf = _lstm_dir_ref(xc, wih_f[n], whh_f[n], b_f[n], False, mm_dtype)
        hb = _lstm_dir_ref(xc, wih_b[n], whh_b[n], b_b[n], True, mm_dtype)
        xc = jnp.concatenate([hf, hb], axis=-1) + xc
        outs.append(xc)
    return jnp.stack(outs, axis=0)


# TODO(synk): variable-length batch path (pad_sequence / unpad) and variational
# dropout (train-mode only) are host-side glue / no-ops at inference; only the
# non-batch eval forward is implemented here.
# TODO(synk): for production pick dim_lstm_stack so H = dim/2 is a multiple of
# 128 (lane-dense gate slices and unmasked hidden-state stores).

if __name__ == "__main__":
    depth = 2
    dim_lstm_in = 16
    dim_lstm_stack = 32
    seq_len = 8

    key = jax.random.PRNGKey(0)
    kx, kp = jax.random.split(key)
    x = jax.random.normal(kx, (seq_len, dim_lstm_in), jnp.float32)
    params = make_params(kp, depth, dim_lstm_in, dim_lstm_stack)

    w_init, wih, whh_f_p, whh_b_p, bias = pack_params(*params)
    out = jax.block_until_ready(
        vardrop_lstm_stack(x, w_init, wih, whh_f_p, whh_b_p, bias))

    ref = jax.block_until_ready(vardrop_lstm_stack_ref(x, *params))
    np.testing.assert_allclose(np.asarray(out), np.asarray(ref), rtol=5e-3, atol=5e-3)

    assert out.shape == (depth + 1, seq_len, dim_lstm_stack)
    print("KERNEL_OK")
</pallas_src>

<mosaic_0001>
module attributes {stable_mosaic.version = 11 : i64} {
  func.func @_stack_kernel(%arg0: i32, %arg1: memref<8x32xf32, #tpu.memory_space<vmem>>, %arg2: memref<1x32x128xbf16, #tpu.memory_space<vmem>>, %arg3: memref<1x16x64xbf16, #tpu.memory_space<vmem>>, %arg4: memref<1x16x64xbf16, #tpu.memory_space<vmem>>, %arg5: memref<1x1x128xf32, #tpu.memory_space<vmem>>, %arg6: memref<1x8x32xf32, #tpu.memory_space<vmem>>, %arg7: memref<8x32xf32, #tpu.memory_space<vmem>>, %arg8: memref<8x128xf32, #tpu.memory_space<vmem>>) attributes {dimension_semantics = [#tpu.dimension_semantics<arbitrary>], iteration_bounds = array<i64: 2>, scalar_prefetch = 0 : i64, scratch_operands = 2 : i64, tpu.core_type = #tpu.core_type<tc>, window_params = [{pipeline_mode = #tpu.pipeline_mode<synchronous>, transform_indices = @transform_0, window_bounds = array<i64: 8, 32>}, {transform_indices = @transform_1, window_bounds = array<i64: 1, 32, 128>}, {transform_indices = @transform_2, window_bounds = array<i64: 1, 16, 64>}, {transform_indices = @transform_3, window_bounds = array<i64: 1, 16, 64>}, {transform_indices = @transform_4, window_bounds = array<i64: 1, 1, 128>}, {transform_indices = @transform_5, window_bounds = array<i64: 1, 8, 32>}]} {
    %c0_i32 = arith.constant 0 : i32
    %0 = arith.cmpi eq, %arg0, %c0_i32 : i32
    %1 = arith.extui %0 : i1 to i32
    %c0_i32_0 = arith.constant 0 : i32
    %2 = arith.cmpi ne, %1, %c0_i32_0 : i32
    scf.if %2 {
      %c0_114 = arith.constant 0 : index
      %c0_115 = arith.constant 0 : index
      %434 = vector.load %arg1[%c0_114, %c0_115] : memref<8x32xf32, #tpu.memory_space<vmem>>, vector<8x32xf32>
      %c0_116 = arith.constant 0 : index
      %c0_117 = arith.constant 0 : index
      %435 = vector.load %arg7[%c0_116, %c0_117] : memref<8x32xf32, #tpu.memory_space<vmem>>, vector<8x32xf32>
      tpu.vector_store %arg7[%c0_116, %c0_117], %434 {strides = array<i32>} : memref<8x32xf32, #tpu.memory_space<vmem>>, vector<8x32xf32>,
    } else {
    }
    %c0 = arith.constant 0 : index
    %c0_1 = arith.constant 0 : index
    %3 = vector.load %arg7[%c0, %c0_1] : memref<8x32xf32, #tpu.memory_space<vmem>>, vector<8x32xf32>
    %4 = arith.truncf %3 : vector<8x32xf32> to vector<8x32xbf16>
    %c0_2 = arith.constant 0 : index
    %c0_3 = arith.constant 0 : index
    %c0_4 = arith.constant 0 : index
    %5 = vector.load %arg2[%c0_2, %c0_3, %c0_4] : memref<1x32x128xbf16, #tpu.memory_space<vmem>>, vector<1x32x128xbf16>
    %6 = vector.shape_cast %5 : vector<1x32x128xbf16> to vector<32x128xbf16>
    %cst = arith.constant dense<0.000000e+00> : vector<8x128xf32>
    %7 = tpu.matmul %4, %6, %cst {dimension_numbers = #tpu.dot_dimension_numbers<[1], [0], [0], [1], [0, 0, 1, 1], [], []>} : vector<8x32xbf16>, vector<32x128xbf16>, vector<8x128xf32> -> vector<8x128xf32>
    %c0_5 = arith.constant 0 : index
    %c0_6 = arith.constant 0 : index
    %c0_7 = arith.constant 0 : index
    %8 = vector.load %arg5[%c0_5, %c0_6, %c0_7] : memref<1x1x128xf32, #tpu.memory_space<vmem>>, vector<1x1x128xf32>
    %9 = vector.shape_cast %8 : vector<1x1x128xf32> to vector<1x128xf32>
    %10 = vector.broadcast %9 : vector<1x128xf32> to vector<8x128xf32>
    %11 = arith.addf %7, %10 : vector<8x128xf32>
    %c0_8 = arith.constant 0 : index
    %c0_9 = arith.constant 0 : index
    %12 = vector.load %arg8[%c0_8, %c0_9] : memref<8x128xf32, #tpu.memory_space<vmem>>, vector<8x128xf32>
    tpu.vector_store %arg8[%c0_8, %c0_9], %11 {strides = array<i32>} : memref<8x128xf32, #tpu.memory_space<vmem>>, vector<8x128xf32>,
    %c0_10 = arith.constant 0 : index
    %c0_11 = arith.constant 0 : index
    %c0_12 = arith.constant 0 : index
    %13 = vector.load %arg3[%c0_10, %c0_11, %c0_12] : memref<1x16x64xbf16, #tpu.memory_space<vmem>>, vector<1x16x64xbf16>
    %14 = vector.shape_cast %13 : vector<1x16x64xbf16> to vector<16x64xbf16>
    %c0_13 = arith.constant 0 : index
    %c0_14 = arith.constant 0 : index
    %c0_15 = arith.constant 0 : index
    %15 = vector.load %arg4[%c0_13, %c0_14, %c0_15] : memref<1x16x64xbf16, #tpu.memory_space<vmem>>, vector<1x16x64xbf16>
    %16 = vector.shape_cast %15 : vector<1x16x64xbf16> to vector<16x64xbf16>
    %cst_16 = arith.constant 0.000000e+00 : f32
    %17 = vector.broadcast %cst_16 : f32 to vector<1x16xf32>
    %c0_i32_17 = arith.constant 0 : i32
    %c7_i32 = arith.constant 7 : i32
    %18 = arith.subi %c7_i32, %c0_i32_17 : i32
    %19 = arith.index_cast %c0_i32_17 : i32 to index
    %c0_18 = arith.constant 0 : index
    %20 = vector.load %arg8[%19, %c0_18] : memref<8x128xf32, #tpu.memory_space<vmem>>, vector<1x64xf32>
    %21 = arith.truncf %17 : vector<1x16xf32> to vector<1x16xbf16>
    %cst_19 = arith.constant dense<0.000000e+00> : vector<1x64xf32>
    %22 = tpu.matmul %21, %14, %cst_19 {dimension_numbers = #tpu.dot_dimension_numbers<[1], [0], [0], [1], [0, 0, 1, 1], [], []>} : vector<1x16xbf16>, vector<16x64xbf16>, vector<1x64xf32> -> vector<1x64xf32>
    %23 = arith.addf %20, %22 : vector<1x64xf32>
    %24 = arith.index_cast %18 : i32 to index
    %c64 = arith.constant 64 : index
    %25 = vector.load %arg8[%24, %c64] : memref<8x128xf32, #tpu.memory_space<vmem>>, vector<1x64xf32>
    %26 = arith.truncf %17 : vector<1x16xf32> to vector<1x16xbf16>
    %cst_20 = arith.constant dense<0.000000e+00> : vector<1x64xf32>
    %27 = tpu.matmul %26, %16, %cst_20 {dimension_numbers = #tpu.dot_dimension_numbers<[1], [0], [0], [1], [0, 0, 1, 1], [], []>} : vector<1x16xbf16>, vector<16x64xbf16>, vector<1x64xf32> -> vector<1x64xf32>
    %28 = arith.addf %25, %27 : vector<1x64xf32>
    %29 = vector.extract_strided_slice %23 {offsets = [0, 0], sizes = [1, 48], strides = [1, 1]} : vector<1x64xf32> to vector<1x48xf32>
    %30 = arith.negf %29 : vector<1x48xf32>
    %31 = math.exp %30 : vector<1x48xf32>
    %cst_21 = arith.constant 1.000000e+00 : f32
    %32 = vector.broadcast %cst_21 : f32 to vector<1x48xf32>
    %33 = arith.addf %32, %31 : vector<1x48xf32>
    %34 = arith.divf %32, %33 : vector<1x48xf32>
    %35 = vector.extract_strided_slice %28 {offsets = [0, 0], sizes = [1, 48], strides = [1, 1]} : vector<1x64xf32> to vector<1x48xf32>
    %36 = arith.negf %35 : vector<1x48xf32>
    %37 = math.exp %36 : vector<1x48xf32>
    %cst_22 = arith.constant 1.000000e+00 : f32
    %38 = vector.broadcast %cst_22 : f32 to vector<1x48xf32>
    %39 = arith.addf %38, %37 : vector<1x48xf32>
    %40 = arith.divf %38, %39 : vector<1x48xf32>
    %41 = vector.extract_strided_slice %23 {offsets = [0, 48], sizes = [1, 16], strides = [1, 1]} : vector<1x64xf32> to vector<1x16xf32>
    %42 = math.tanh %41 : vector<1x16xf32>
    %43 = vector.extract_strided_slice %28 {offsets = [0, 48], sizes = [1, 16], strides = [1, 1]} : vector<1x64xf32> to vector<1x16xf32>
    %44 = math.tanh %43 : vector<1x16xf32>
    %45 = vector.extract_strided_slice %34 {offsets = [0, 16], sizes = [1, 16], strides = [1, 1]} : vector<1x48xf32> to vector<1x16xf32>
    %46 = arith.mulf %45, %17 : vector<1x16xf32>
    %47 = vector.extract_strided_slice %34 {offsets = [0, 0], sizes = [1, 16], strides = [1, 1]} : vector<1x48xf32> to vector<1x16xf32>
    %48 = arith.mulf %47, %42 : vector<1x16xf32>
    %49 = arith.addf %46, %48 : vector<1x16xf32>
    %50 = vector.extract_strided_slice %40 {offsets = [0, 16], sizes = [1, 16], strides = [1, 1]} : vector<1x48xf32> to vector<1x16xf32>
    %51 = arith.mulf %50, %17 : vector<1x16xf32>
    %52 = vector.extract_strided_slice %40 {offsets = [0, 0], sizes = [1, 16], strides = [1, 1]} : vector<1x48xf32> to vector<1x16xf32>
    %53 = arith.mulf %52, %44 : vector<1x16xf32>
    %54 = arith.addf %51, %53 : vector<1x16xf32>
    %55 = vector.extract_strided_slice %34 {offsets = [0, 32], sizes = [1, 16], strides = [1, 1]} : vector<1x48xf32> to vector<1x16xf32>
    %56 = math.tanh %49 : vector<1x16xf32>
    %57 = arith.mulf %55, %56 : vector<1x16xf32>
    %58 = vector.extract_strided_slice %40 {offsets = [0, 32], sizes = [1, 16], strides = [1, 1]} : vector<1x48xf32> to vector<1x16xf32>
    %59 = math.tanh %54 : vector<1x16xf32>
    %60 = arith.mulf %58, %59 : vector<1x16xf32>
    %c0_23 = arith.constant 0 : index
    %61 = arith.index_cast %c0_i32_17 : i32 to index
    %c0_24 = arith.constant 0 : index
    %62 = vector.load %arg6[%c0_23, %61, %c0_24] : memref<1x8x32xf32, #tpu.memory_space<vmem>>, vector<1x1x16xf32>
    %63 = vector.shape_cast %62 : vector<1x1x16xf32> to vector<1x16xf32>
    %64 = vector.shape_cast %57 : vector<1x16xf32> to vector<1x1x16xf32>
    tpu.vector_store %arg6[%c0_23, %61, %c0_24], %64 {strides = array<i32>} : memref<1x8x32xf32, #tpu.memory_space<vmem>>, vector<1x1x16xf32>,
    %c0_25 = arith.constant 0 : index
    %65 = arith.index_cast %18 : i32 to index
    %c16 = arith.constant 16 : index
    %66 = vector.load %arg6[%c0_25, %65, %c16] : memref<1x8x32xf32, #tpu.memory_space<vmem>>, vector<1x1x16xf32>
    %67 = vector.shape_cast %66 : vector<1x1x16xf32> to vector<1x16xf32>
    %68 = vector.shape_cast %60 : vector<1x16xf32> to vector<1x1x16xf32>
    tpu.vector_store %arg6[%c0_25, %65, %c16], %68 {strides = array<i32>} : memref<1x8x32xf32, #tpu.memory_space<vmem>>, vector<1x1x16xf32>,
    %c1_i32 = arith.constant 1 : i32
    %c7_i32_26 = arith.constant 7 : i32
    %69 = arith.subi %c7_i32_26, %c1_i32 : i32
    %70 = arith.index_cast %c1_i32 : i32 to index
    %c0_27 = arith.constant 0 : index
    %71 = vector.load %arg8[%70, %c0_27] : memref<8x128xf32, #tpu.memory_space<vmem>>, vector<1x64xf32>
    %72 = arith.truncf %57 : vector<1x16xf32> to vector<1x16xbf16>
    %cst_28 = arith.constant dense<0.000000e+00> : vector<1x64xf32>
    %73 = tpu.matmul %72, %14, %cst_28 {dimension_numbers = #tpu.dot_dimension_numbers<[1], [0], [0], [1], [0, 0, 1, 1], [], []>} : vector<1x16xbf16>, vector<16x64xbf16>, vector<1x64xf32> -> vector<1x64xf32>
    %74 = arith.addf %71, %73 : vector<1x64xf32>
    %75 = arith.index_cast %69 : i32 to index
    %c64_29 = arith.constant 64 : index
    %76 = vector.load %arg8[%75, %c64_29] : memref<8x128xf32, #tpu.memory_space<vmem>>, vector<1x64xf32>
    %77 = arith.truncf %60 : vector<1x16xf32> to vector<1x16xbf16>
    %cst_30 = arith.constant dense<0.000000e+00> : vector<1x64xf32>
    %78 = tpu.matmul %77, %16, %cst_30 {dimension_numbers = #tpu.dot_dimension_numbers<[1], [0], [0], [1], [0, 0, 1, 1], [], []>} : vector<1x16xbf16>, vector<16x64xbf16>, vector<1x64xf32> -> vector<1x64xf32>
    %79 = arith.addf %76, %78 : vector<1x64xf32>
    %80 = vector.extract_strided_slice %74 {offsets = [0, 0], sizes = [1, 48], strides = [1, 1]} : vector<1x64xf32> to vector<1x48xf32>
    %81 = arith.negf %80 : vector<1x48xf32>
    %82 = math.exp %81 : vector<1x48xf32>
    %cst_31 = arith.constant 1.000000e+00 : f32
    %83 = vector.broadcast %cst_31 : f32 to vector<1x48xf32>
    %84 = arith.addf %83, %82 : vector<1x48xf32>
    %85 = arith.divf %83, %84 : vector<1x48xf32>
    %86 = vector.extract_strided_slice %79 {offsets = [0, 0], sizes = [1, 48], strides = [1, 1]} : vector<1x64xf32> to vector<1x48xf32>
    %87 = arith.negf %86 : vector<1x48xf32>
    %88 = math.exp %87 : vector<1x48xf32>
    %cst_32 = arith.constant 1.000000e+00 : f32
    %89 = vector.broadcast %cst_32 : f32 to vector<1x48xf32>
    %90 = arith.addf %89, %88 : vector<1x48xf32>
    %91 = arith.divf %89, %90 : vector<1x48xf32>
    %92 = vector.extract_strided_slice %74 {offsets = [0, 48], sizes = [1, 16], strides = [1, 1]} : vector<1x64xf32> to vector<1x16xf32>
    %93 = math.tanh %92 : vector<1x16xf32>
    %94 = vector.extract_strided_slice %79 {offsets = [0, 48], sizes = [1, 16], strides = [1, 1]} : vector<1x64xf32> to vector<1x16xf32>
    %95 = math.tanh %94 : vector<1x16xf32>
    %96 = vector.extract_strided_slice %85 {offsets = [0, 16], sizes = [1, 16], strides = [1, 1]} : vector<1x48xf32> to vector<1x16xf32>
    %97 = arith.mulf %96, %49 : vector<1x16xf32>
    %98 = vector.extract_strided_slice %85 {offsets = [0, 0], sizes = [1, 16], strides = [1, 1]} : vector<1x48xf32> to vector<1x16xf32>
    %99 = arith.mulf %98, %93 : vector<1x16xf32>
    %100 = arith.addf %97, %99 : vector<1x16xf32>
    %101 = vector.extract_strided_slice %91 {offsets = [0, 16], sizes = [1, 16], strides = [1, 1]} : vector<1x48xf32> to vector<1x16xf32>
    %102 = arith.mulf %101, %54 : vector<1x16xf32>
    %103 = vector.extract_strided_slice %91 {offsets = [0, 0], sizes = [1, 16], strides = [1, 1]} : vector<1x48xf32> to vector<1x16xf32>
    %104 = arith.mulf %103, %95 : vector<1x16xf32>
    %105 = arith.addf %102, %104 : vector<1x16xf32>
    %106 = vector.extract_strided_slice %85 {offsets = [0, 32], sizes = [1, 16], strides = [1, 1]} : vector<1x48xf32> to vector<1x16xf32>
    %107 = math.tanh %100 : vector<1x16xf32>
    %108 = arith.mulf %106, %107 : vector<1x16xf32>
    %109 = vector.extract_strided_slice %91 {offsets = [0, 32], sizes = [1, 16], strides = [1, 1]} : vector<1x48xf32> to vector<1x16xf32>
    %110 = math.tanh %105 : vector<1x16xf32>
    %111 = arith.mulf %109, %110 : vector<1x16xf32>
    %c0_33 = arith.constant 0 : index
    %112 = arith.index_cast %c1_i32 : i32 to index
    %c0_34 = arith.constant 0 : index
    %113 = vector.load %arg6[%c0_33, %112, %c0_34] : memref<1x8x32xf32, #tpu.memory_space<vmem>>, vector<1x1x16xf32>
    %114 = vector.shape_cast %113 : vector<1x1x16xf32> to vector<1x16xf32>
    %115 = vector.shape_cast %108 : vector<1x16xf32> to vector<1x1x16xf32>
    tpu.vector_store %arg6[%c0_33, %112, %c0_34], %115 {strides = array<i32>} : memref<1x8x32xf32, #tpu.memory_space<vmem>>, vector<1x1x16xf32>,
    %c0_35 = arith.constant 0 : index
    %116 = arith.index_cast %69 : i32 to index
    %c16_36 = arith.constant 16 : index
    %117 = vector.load %arg6[%c0_35, %116, %c16_36] : memref<1x8x32xf32, #tpu.memory_space<vmem>>, vector<1x1x16xf32>
    %118 = vector.shape_cast %117 : vector<1x1x16xf32> to vector<1x16xf32>
    %119 = vector.shape_cast %111 : vector<1x16xf32> to vector<1x1x16xf32>
    tpu.vector_store %arg6[%c0_35, %116, %c16_36], %119 {strides = array<i32>} : memref<1x8x32xf32, #tpu.memory_space<vmem>>, vector<1x1x16xf32>,
    %c2_i32 = arith.constant 2 : i32
    %c7_i32_37 = arith.constant 7 : i32
    %120 = arith.subi %c7_i32_37, %c2_i32 : i32
    %121 = arith.index_cast %c2_i32 : i32 to index
    %c0_38 = arith.constant 0 : index
    %122 = vector.load %arg8[%121, %c0_38] : memref<8x128xf32, #tpu.memory_space<vmem>>, vector<1x64xf32>
    %123 = arith.truncf %108 : vector<1x16xf32> to vector<1x16xbf16>
    %cst_39 = arith.constant dense<0.000000e+00> : vector<1x64xf32>
    %124 = tpu.matmul %123, %14, %cst_39 {dimension_numbers = #tpu.dot_dimension_numbers<[1], [0], [0], [1], [0, 0, 1, 1], [], []>} : vector<1x16xbf16>, vector<16x64xbf16>, vector<1x64xf32> -> vector<1x64xf32>
    %125 = arith.addf %122, %124 : vector<1x64xf32>
    %126 = arith.index_cast %120 : i32 to index
    %c64_40 = arith.constant 64 : index
    %127 = vector.load %arg8[%126, %c64_40] : memref<8x128xf32, #tpu.memory_space<vmem>>, vector<1x64xf32>
    %128 = arith.truncf %111 : vector<1x16xf32> to vector<1x16xbf16>
    %cst_41 = arith.constant dense<0.000000e+00> : vector<1x64xf32>
    %129 = tpu.matmul %128, %16, %cst_41 {dimension_numbers = #tpu.dot_dimension_numbers<[1], [0], [0], [1], [0, 0, 1, 1], [], []>} : vector<1x16xbf16>, vector<16x64xbf16>, vector<1x64xf32> -> vector<1x64xf32>
    %130 = arith.addf %127, %129 : vector<1x64xf32>
    %131 = vector.extract_strided_slice %125 {offsets = [0, 0], sizes = [1, 48], strides = [1, 1]} : vector<1x64xf32> to vector<1x48xf32>
    %132 = arith.negf %131 : vector<1x48xf32>
    %133 = math.exp %132 : vector<1x48xf32>
    %cst_42 = arith.constant 1.000000e+00 : f32
    %134 = vector.broadcast %cst_42 : f32 to vector<1x48xf32>
    %135 = arith.addf %134, %133 : vector<1x48xf32>
    %136 = arith.divf %134, %135 : vector<1x48xf32>
    %137 = vector.extract_strided_slice %130 {offsets = [0, 0], sizes = [1, 48], strides = [1, 1]} : vector<1x64xf32> to vector<1x48xf32>
    %138 = arith.negf %137 : vector<1x48xf32>
    %139 = math.exp %138 : vector<1x48xf32>
    %cst_43 = arith.constant 1.000000e+00 : f32
    %140 = vector.broadcast %cst_43 : f32 to vector<1x48xf32>
    %141 = arith.addf %140, %139 : vector<1x48xf32>
    %142 = arith.divf %140, %141 : vector<1x48xf32>
    %143 = vector.extract_strided_slice %125 {offsets = [0, 48], sizes = [1, 16], strides = [1, 1]} : vector<1x64xf32> to vector<1x16xf32>
    %144 = math.tanh %143 : vector<1x16xf32>
    %145 = vector.extract_strided_slice %130 {offsets = [0, 48], sizes = [1, 16], strides = [1, 1]} : vector<1x64xf32> to vector<1x16xf32>
    %146 = math.tanh %145 : vector<1x16xf32>
    %147 = vector.extract_strided_slice %136 {offsets = [0, 16], sizes = [1, 16], strides = [1, 1]} : vector<1x48xf32> to vector<1x16xf32>
    %148 = arith.mulf %147, %100 : vector<1x16xf32>
    %149 = vector.extract_strided_slice %136 {offsets = [0, 0], sizes = [1, 16], strides = [1, 1]} : vector<1x48xf32> to vector<1x16xf32>
    %150 = arith.mulf %149, %144 : vector<1x16xf32>
    %151 = arith.addf %148, %150 : vector<1x16xf32>
    %152 = vector.extract_strided_slice %142 {offsets = [0, 16], sizes = [1, 16], strides = [1, 1]} : vector<1x48xf32> to vector<1x16xf32>
    %153 = arith.mulf %152, %105 : vector<1x16xf32>
    %154 = vector.extract_strided_slice %142 {offsets = [0, 0], sizes = [1, 16], strides = [1, 1]} : vector<1x48xf32> to vector<1x16xf32>
    %155 = arith.mulf %154, %146 : vector<1x16xf32>
    %156 = arith.addf %153, %155 : vector<1x16xf32>
    %157 = vector.extract_strided_slice %136 {offsets = [0, 32], sizes = [1, 16], strides = [1, 1]} : vector<1x48xf32> to vector<1x16xf32>
    %158 = math.tanh %151 : vector<1x16xf32>
    %159 = arith.mulf %157, %158 : vector<1x16xf32>
    %160 = vector.extract_strided_slice %142 {offsets = [0, 32], sizes = [1, 16], strides = [1, 1]} : vector<1x48xf32> to vector<1x16xf32>
    %161 = math.tanh %156 : vector<1x16xf32>
    %162 = arith.mulf %160, %161 : vector<1x16xf32>
    %c0_44 = arith.constant 0 : index
    %163 = arith.index_cast %c2_i32 : i32 to index
    %c0_45 = arith.constant 0 : index
    %164 = vector.load %arg6[%c0_44, %163, %c0_45] : memref<1x8x32xf32, #tpu.memory_space<vmem>>, vector<1x1x16xf32>
    %165 = vector.shape_cast %164 : vector<1x1x16xf32> to vector<1x16xf32>
    %166 = vector.shape_cast %159 : vector<1x16xf32> to vector<1x1x16xf32>
    tpu.vector_store %arg6[%c0_44, %163, %c0_45], %166 {strides = array<i32>} : memref<1x8x32xf32, #tpu.memory_space<vmem>>, vector<1x1x16xf32>,
    %c0_46 = arith.constant 0 : index
    %167 = arith.index_cast %120 : i32 to index
    %c16_47 = arith.constant 16 : index
    %168 = vector.load %arg6[%c0_46, %167, %c16_47] : memref<1x8x32xf32, #tpu.memory_space<vmem>>, vector<1x1x16xf32>
    %169 = vector.shape_cast %168 : vector<1x1x16xf32> to vector<1x16xf32>
    %170 = vector.shape_cast %162 : vector<1x16xf32> to vector<1x1x16xf32>
    tpu.vector_store %arg6[%c0_46, %167, %c16_47], %170 {strides = array<i32>} : memref<1x8x32xf32, #tpu.memory_space<vmem>>, vector<1x1x16xf32>,
    %c3_i32 = arith.constant 3 : i32
    %c7_i32_48 = arith.constant 7 : i32
    %171 = arith.subi %c7_i32_48, %c3_i32 : i32
    %172 = arith.index_cast %c3_i32 : i32 to index
    %c0_49 = arith.constant 0 : index
    %173 = vector.load %arg8[%172, %c0_49] : memref<8x128xf32, #tpu.memory_space<vmem>>, vector<1x64xf32>
    %174 = arith.truncf %159 : vector<1x16xf32> to vector<1x16xbf16>
    %cst_50 = arith.constant dense<0.000000e+00> : vector<1x64xf32>
    %175 = tpu.matmul %174, %14, %cst_50 {dimension_numbers = #tpu.dot_dimension_numbers<[1], [0], [0], [1], [0, 0, 1, 1], [], []>} : vector<1x16xbf16>, vector<16x64xbf16>, vector<1x64xf32> -> vector<1x64xf32>
    %176 = arith.addf %173, %175 : vector<1x64xf32>
    %177 = arith.index_cast %171 : i32 to index
    %c64_51 = arith.constant 64 : index
    %178 = vector.load %arg8[%177, %c64_51] : memref<8x128xf32, #tpu.memory_space<vmem>>, vector<1x64xf32>
    %179 = arith.truncf %162 : vector<1x16xf32> to vector<1x16xbf16>
    %cst_52 = arith.constant dense<0.000000e+00> : vector<1x64xf32>
    %180 = tpu.matmul %179, %16, %cst_52 {dimension_numbers = #tpu.dot_dimension_numbers<[1], [0], [0], [1], [0, 0, 1, 1], [], []>} : vector<1x16xbf16>, vector<16x64xbf16>, vector<1x64xf32> -> vector<1x64xf32>
    %181 = arith.addf %178, %180 : vector<1x64xf32>
    %182 = vector.extract_strided_slice %176 {offsets = [0, 0], sizes = [1, 48], strides = [1, 1]} : vector<1x64xf32> to vector<1x48xf32>
    %183 = arith.negf %182 : vector<1x48xf32>
    %184 = math.exp %183 : vector<1x48xf32>
    %cst_53 = arith.constant 1.000000e+00 : f32
    %185 = vector.broadcast %cst_53 : f32 to vector<1x48xf32>
    %186 = arith.addf %185, %184 : vector<1x48xf32>
    %187 = arith.divf %185, %186 : vector<1x48xf32>
    %188 = vector.extract_strided_slice %181 {offsets = [0, 0], sizes = [1, 48], strides = [1, 1]} : vector<1x64xf32> to vector<1x48xf32>
    %189 = arith.negf %188 : vector<1x48xf32>
    %190 = math.exp %189 : vector<1x48xf32>
    %cst_54 = arith.constant 1.000000e+00 : f32
    %191 = vector.broadcast %cst_54 : f32 to vector<1x48xf32>
    %192 = arith.addf %191, %190 : vector<1x48xf32>
    %193 = arith.divf %191, %192 : vector<1x48xf32>
    %194 = vector.extract_strided_slice %176 {offsets = [0, 48], sizes = [1, 16], strides = [1, 1]} : vector<1x64xf32> to vector<1x16xf32>
    %195 = math.tanh %194 : vector<1x16xf32>
    %196 = vector.extract_strided_slice %181 {offsets = [0, 48], sizes = [1, 16], strides = [1, 1]} : vector<1x64xf32> to vector<1x16xf32>
    %197 = math.tanh %196 : vector<1x16xf32>
    %198 = vector.extract_strided_slice %187 {offsets = [0, 16], sizes = [1, 16], strides = [1, 1]} : vector<1x48xf32> to vector<1x16xf32>
    %199 = arith.mulf %198, %151 : vector<1x16xf32>
    %200 = vector.extract_strided_slice %187 {offsets = [0, 0], sizes = [1, 16], strides = [1, 1]} : vector<1x48xf32> to vector<1x16xf32>
    %201 = arith.mulf %200, %195 : vector<1x16xf32>
    %202 = arith.addf %199, %201 : vector<1x16xf32>
    %203 = vector.extract_strided_slice %193 {offsets = [0, 16], sizes = [1, 16], strides = [1, 1]} : vector<1x48xf32> to vector<1x16xf32>
    %204 = arith.mulf %203, %156 : vector<1x16xf32>
    %205 = vector.extract_strided_slice %193 {offsets = [0, 0], sizes = [1, 16], strides = [1, 1]} : vector<1x48xf32> to vector<1x16xf32>
    %206 = arith.mulf %205, %197 : vector<1x16xf32>
    %207 = arith.addf %204, %206 : vector<1x16xf32>
    %208 = vector.extract_strided_slice %187 {offsets = [0, 32], sizes = [1, 16], strides = [1, 1]} : vector<1x48xf32> to vector<1x16xf32>
    %209 = math.tanh %202 : vector<1x16xf32>
    %210 = arith.mulf %208, %209 : vector<1x16xf32>
    %211 = vector.extract_strided_slice %193 {offsets = [0, 32], sizes = [1, 16], strides = [1, 1]} : vector<1x48xf32> to vector<1x16xf32>
    %212 = math.tanh %207 : vector<1x16xf32>
    %213 = arith.mulf %211, %212 : vector<1x16xf32>
    %c0_55 = arith.constant 0 : index
    %214 = arith.index_cast %c3_i32 : i32 to index
    %c0_56 = arith.constant 0 : index
    %215 = vector.load %arg6[%c0_55, %214, %c0_56] : memref<1x8x32xf32, #tpu.memory_space<vmem>>, vector<1x1x16xf32>
    %216 = vector.shape_cast %215 : vector<1x1x16xf32> to vector<1x16xf32>
    %217 = vector.shape_cast %210 : vector<1x16xf32> to vector<1x1x16xf32>
    tpu.vector_store %arg6[%c0_55, %214, %c0_56], %217 {strides = array<i32>} : memref<1x8x32xf32, #tpu.memory_space<vmem>>, vector<1x1x16xf32>,
    %c0_57 = arith.constant 0 : index
    %218 = arith.index_cast %171 : i32 to index
    %c16_58 = arith.constant 16 : index
    %219 = vector.load %arg6[%c0_57, %218, %c16_58] : memref<1x8x32xf32, #tpu.memory_space<vmem>>, vector<1x1x16xf32>
    %220 = vector.shape_cast %219 : vector<1x1x16xf32> to vector<1x16xf32>
    %221 = vector.shape_cast %213 : vector<1x16xf32> to vector<1x1x16xf32>
    tpu.vector_store %arg6[%c0_57, %218, %c16_58], %221 {strides = array<i32>} : memref<1x8x32xf32, #tpu.memory_space<vmem>>, vector<1x1x16xf32>,
    %c4_i32 = arith.constant 4 : i32
    %c7_i32_59 = arith.constant 7 : i32
    %222 = arith.subi %c7_i32_59, %c4_i32 : i32
    %223 = arith.index_cast %c4_i32 : i32 to index
    %c0_60 = arith.constant 0 : index
    %224 = vector.load %arg8[%223, %c0_60] : memref<8x128xf32, #tpu.memory_space<vmem>>, vector<1x64xf32>
    %225 = arith.truncf %210 : vector<1x16xf32> to vector<1x16xbf16>
    %cst_61 = arith.constant dense<0.000000e+00> : vector<1x64xf32>
    %226 = tpu.matmul %225, %14, %cst_61 {dimension_numbers = #tpu.dot_dimension_numbers<[1], [0], [0], [1], [0, 0, 1, 1], [], []>} : vector<1x16xbf16>, vector<16x64xbf16>, vector<1x64xf32> -> vector<1x64xf32>
    %227 = arith.addf %224, %226 : vector<1x64xf32>
    %228 = arith.index_cast %222 : i32 to index
    %c64_62 = arith.constant 64 : index
    %229 = vector.load %arg8[%228, %c64_62] : memref<8x128xf32, #tpu.memory_space<vmem>>, vector<1x64xf32>
    %230 = arith.truncf %213 : vector<1x16xf32> to vector<1x16xbf16>
    %cst_63 = arith.constant dense<0.000000e+00> : vector<1x64xf32>
    %231 = tpu.matmul %230, %16, %cst_63 {dimension_numbers = #tpu.dot_dimension_numbers<[1], [0], [0], [1], [0, 0, 1, 1], [], []>} : vector<1x16xbf16>, vector<16x64xbf16>, vector<1x64xf32> -> vector<1x64xf32>
    %232 = arith.addf %229, %231 : vector<1x64xf32>
    %233 = vector.extract_strided_slice %227 {offsets = [0, 0], sizes = [1, 48], strides = [1, 1]} : vector<1x64xf32> to vector<1x48xf32>
    %234 = arith.negf %233 : vector<1x48xf32>
    %235 = math.exp %234 : vector<1x48xf32>
    %cst_64 = arith.constant 1.000000e+00 : f32
    %236 = vector.broadcast %cst_64 : f32 to vector<1x48xf32>
    %237 = arith.addf %236, %235 : vector<1x48xf32>
    %238 = arith.divf %236, %237 : vector<1x48xf32>
    %239 = vector.extract_strided_slice %232 {offsets = [0, 0], sizes = [1, 48], strides = [1, 1]} : vector<1x64xf32> to vector<1x48xf32>
    %240 = arith.negf %239 : vector<1x48xf32>
    %241 = math.exp %240 : vector<1x48xf32>
    %cst_65 = arith.constant 1.000000e+00 : f32
    %242 = vector.broadcast %cst_65 : f32 to vector<1x48xf32>
    %243 = arith.addf %242, %241 : vector<1x48xf32>
    %244 = arith.divf %242, %243 : vector<1x48xf32>
    %245 = vector.extract_strided_slice %227 {offsets = [0, 48], sizes = [1, 16], strides = [1, 1]} : vector<1x64xf32> to vector<1x16xf32>
    %246 = math.tanh %245 : vector<1x16xf32>
    %247 = vector.extract_strided_slice %232 {offsets = [0, 48], sizes = [1, 16], strides = [1, 1]} : vector<1x64xf32> to vector<1x16xf32>
    %248 = math.tanh %247 : vector<1x16xf32>
    %249 = vector.extract_strided_slice %238 {offsets = [0, 16], sizes = [1, 16], strides = [1, 1]} : vector<1x48xf32> to vector<1x16xf32>
    %250 = arith.mulf %249, %202 : vector<1x16xf32>
    %251 = vector.extract_strided_slice %238 {offsets = [0, 0], sizes = [1, 16], strides = [1, 1]} : vector<1x48xf32> to vector<1x16xf32>
    %252 = arith.mulf %251, %246 : vector<1x16xf32>
    %253 = arith.addf %250, %252 : vector<1x16xf32>
    %254 = vector.extract_strided_slice %244 {offsets = [0, 16], sizes = [1, 16], strides = [1, 1]} : vector<1x48xf32> to vector<1x16xf32>
    %255 = arith.mulf %254, %207 : vector<1x16xf32>
    %256 = vector.extract_strided_slice %244 {offsets = [0, 0], sizes = [1, 16], strides = [1, 1]} : vector<1x48xf32> to vector<1x16xf32>
    %257 = arith.mulf %256, %248 : vector<1x16xf32>
    %258 = arith.addf %255, %257 : vector<1x16xf32>
    %259 = vector.extract_strided_slice %238 {offsets = [0, 32], sizes = [1, 16], strides = [1, 1]} : vector<1x48xf32> to vector<1x16xf32>
    %260 = math.tanh %253 : vector<1x16xf32>
    %261 = arith.mulf %259, %260 : vector<1x16xf32>
    %262 = vector.extract_strided_slice %244 {offsets = [0, 32], sizes = [1, 16], strides = [1, 1]} : vector<1x48xf32> to vector<1x16xf32>
    %263 = math.tanh %258 : vector<1x16xf32>
    %264 = arith.mulf %262, %263 : vector<1x16xf32>
    %c0_66 = arith.constant 0 : index
    %265 = arith.index_cast %c4_i32 : i32 to index
    %c0_67 = arith.constant 0 : index
    %266 = vector.load %arg6[%c0_66, %265, %c0_67] : memref<1x8x32xf32, #tpu.memory_space<vmem>>, vector<1x1x16xf32>
    %267 = vector.shape_cast %266 : vector<1x1x16xf32> to vector<1x16xf32>
    %268 = vector.shape_cast %261 : vector<1x16xf32> to vector<1x1x16xf32>
    tpu.vector_store %arg6[%c0_66, %265, %c0_67], %268 {strides = array<i32>} : memref<1x8x32xf32, #tpu.memory_space<vmem>>, vector<1x1x16xf32>,
    %c0_68 = arith.constant 0 : index
    %269 = arith.index_cast %222 : i32 to index
    %c16_69 = arith.constant 16 : index
    %270 = vector.load %arg6[%c0_68, %269, %c16_69] : memref<1x8x32xf32, #tpu.memory_space<vmem>>, vector<1x1x16xf32>
    %271 = vector.shape_cast %270 : vector<1x1x16xf32> to vector<1x16xf32>
    %272 = vector.shape_cast %264 : vector<1x16xf32> to vector<1x1x16xf32>
    tpu.vector_store %arg6[%c0_68, %269, %c16_69], %272 {strides = array<i32>} : memref<1x8x32xf32, #tpu.memory_space<vmem>>, vector<1x1x16xf32>,
    %c5_i32 = arith.constant 5 : i32
    %c7_i32_70 = arith.constant 7 : i32
    %273 = arith.subi %c7_i32_70, %c5_i32 : i32
    %274 = arith.index_cast %c5_i32 : i32 to index
    %c0_71 = arith.constant 0 : index
    %275 = vector.load %arg8[%274, %c0_71] : memref<8x128xf32, #tpu.memory_space<vmem>>, vector<1x64xf32>
    %276 = arith.truncf %261 : vector<1x16xf32> to vector<1x16xbf16>
    %cst_72 = arith.constant dense<0.000000e+00> : vector<1x64xf32>
    %277 = tpu.matmul %276, %14, %cst_72 {dimension_numbers = #tpu.dot_dimension_numbers<[1], [0], [0], [1], [0, 0, 1, 1], [], []>} : vector<1x16xbf16>, vector<16x64xbf16>, vector<1x64xf32> -> vector<1x64xf32>
    %278 = arith.addf %275, %277 : vector<1x64xf32>
    %279 = arith.index_cast %273 : i32 to index
    %c64_73 = arith.constant 64 : index
    %280 = vector.load %arg8[%279, %c64_73] : memref<8x128xf32, #tpu.memory_space<vmem>>, vector<1x64xf32>
    %281 = arith.truncf %264 : vector<1x16xf32> to vector<1x16xbf16>
    %cst_74 = arith.constant dense<0.000000e+00> : vector<1x64xf32>
    %282 = tpu.matmul %281, %16, %cst_74 {dimension_numbers = #tpu.dot_dimension_numbers<[1], [0], [0], [1], [0, 0, 1, 1], [], []>} : vector<1x16xbf16>, vector<16x64xbf16>, vector<1x64xf32> -> vector<1x64xf32>
    %283 = arith.addf %280, %282 : vector<1x64xf32>
    %284 = vector.extract_strided_slice %278 {offsets = [0, 0], sizes = [1, 48], strides = [1, 1]} : vector<1x64xf32> to vector<1x48xf32>
    %285 = arith.negf %284 : vector<1x48xf32>
    %286 = math.exp %285 : vector<1x48xf32>
    %cst_75 = arith.constant 1.000000e+00 : f32
    %287 = vector.broadcast %cst_75 : f32 to vector<1x48xf32>
    %288 = arith.addf %287, %286 : vector<1x48xf32>
    %289 = arith.divf %287, %288 : vector<1x48xf32>
    %290 = vector.extract_strided_slice %283 {offsets = [0, 0], sizes = [1, 48], strides = [1, 1]} : vector<1x64xf32> to vector<1x48xf32>
    %291 = arith.negf %290 : vector<1x48xf32>
    %292 = math.exp %291 : vector<1x48xf32>
    %cst_76 = arith.constant 1.000000e+00 : f32
    %293 = vector.broadcast %cst_76 : f32 to vector<1x48xf32>
    %294 = arith.addf %293, %292 : vector<1x48xf32>
    %295 = arith.divf %293, %294 : vector<1x48xf32>
    %296 = vector.extract_strided_slice %278 {offsets = [0, 48], sizes = [1, 16], strides = [1, 1]} : vector<1x64xf32> to vector<1x16xf32>
    %297 = math.tanh %296 : vector<1x16xf32>
    %298 = vector.extract_strided_slice %283 {offsets = [0, 48], sizes = [1, 16], strides = [1, 1]} : vector<1x64xf32> to vector<1x16xf32>
    %299 = math.tanh %298 : vector<1x16xf32>
    %300 = vector.extract_strided_slice %289 {offsets = [0, 16], sizes = [1, 16], strides = [1, 1]} : vector<1x48xf32> to vector<1x16xf32>
    %301 = arith.mulf %300, %253 : vector<1x16xf32>
    %302 = vector.extract_strided_slice %289 {offsets = [0, 0], sizes = [1, 16], strides = [1, 1]} : vector<1x48xf32> to vector<1x16xf32>
    %303 = arith.mulf %302, %297 : vector<1x16xf32>
    %304 = arith.addf %301, %303 : vector<1x16xf32>
    %305 = vector.extract_strided_slice %295 {offsets = [0, 16], sizes = [1, 16], strides = [1, 1]} : vector<1x48xf32> to vector<1x16xf32>
    %306 = arith.mulf %305, %258 : vector<1x16xf32>
    %307 = vector.extract_strided_slice %295 {offsets = [0, 0], sizes = [1, 16], strides = [1, 1]} : vector<1x48xf32> to vector<1x16xf32>
    %308 = arith.mulf %307, %299 : vector<1x16xf32>
    %309 = arith.addf %306, %308 : vector<1x16xf32>
    %310 = vector.extract_strided_slice %289 {offsets = [0, 32], sizes = [1, 16], strides = [1, 1]} : vector<1x48xf32> to vector<1x16xf32>
    %311 = math.tanh %304 : vector<1x16xf32>
    %312 = arith.mulf %310, %311 : vector<1x16xf32>
    %313 = vector.extract_strided_slice %295 {offsets = [0, 32], sizes = [1, 16], strides = [1, 1]} : vector<1x48xf32> to vector<1x16xf32>
    %314 = math.tanh %309 : vector<1x16xf32>
    %315 = arith.mulf %313, %314 : vector<1x16xf32>
    %c0_77 = arith.constant 0 : index
    %316 = arith.index_cast %c5_i32 : i32 to index
    %c0_78 = arith.constant 0 : index
    %317 = vector.load %arg6[%c0_77, %316, %c0_78] : memref<1x8x32xf32, #tpu.memory_space<vmem>>, vector<1x1x16xf32>
    %318 = vector.shape_cast %317 : vector<1x1x16xf32> to vector<1x16xf32>
    %319 = vector.shape_cast %312 : vector<1x16xf32> to vector<1x1x16xf32>
    tpu.vector_store %arg6[%c0_77, %316, %c0_78], %319 {strides = array<i32>} : memref<1x8x32xf32, #tpu.memory_space<vmem>>, vector<1x1x16xf32>,
    %c0_79 = arith.constant 0 : index
    %320 = arith.index_cast %273 : i32 to index
    %c16_80 = arith.constant 16 : index
    %321 = vector.load %arg6[%c0_79, %320, %c16_80] : memref<1x8x32xf32, #tpu.memory_space<vmem>>, vector<1x1x16xf32>
    %322 = vector.shape_cast %321 : vector<1x1x16xf32> to vector<1x16xf32>
    %323 = vector.shape_cast %315 : vector<1x16xf32> to vector<1x1x16xf32>
    tpu.vector_store %arg6[%c0_79, %320, %c16_80], %323 {strides = array<i32>} : memref<1x8x32xf32, #tpu.memory_space<vmem>>, vector<1x1x16xf32>,
    %c6_i32 = arith.constant 6 : i32
    %c7_i32_81 = arith.constant 7 : i32
    %324 = arith.subi %c7_i32_81, %c6_i32 : i32
    %325 = arith.index_cast %c6_i32 : i32 to index
    %c0_82 = arith.constant 0 : index
    %326 = vector.load %arg8[%325, %c0_82] : memref<8x128xf32, #tpu.memory_space<vmem>>, vector<1x64xf32>
    %327 = arith.truncf %312 : vector<1x16xf32> to vector<1x16xbf16>
    %cst_83 = arith.constant dense<0.000000e+00> : vector<1x64xf32>
    %328 = tpu.matmul %327, %14, %cst_83 {dimension_numbers = #tpu.dot_dimension_numbers<[1], [0], [0], [1], [0, 0, 1, 1], [], []>} : vector<1x16xbf16>, vector<16x64xbf16>, vector<1x64xf32> -> vector<1x64xf32>
    %329 = arith.addf %326, %328 : vector<1x64xf32>
    %330 = arith.index_cast %324 : i32 to index
    %c64_84 = arith.constant 64 : index
    %331 = vector.load %arg8[%330, %c64_84] : memref<8x128xf32, #tpu.memory_space<vmem>>, vector<1x64xf32>
    %332 = arith.truncf %315 : vector<1x16xf32> to vector<1x16xbf16>
    %cst_85 = arith.constant dense<0.000000e+00> : vector<1x64xf32>
    %333 = tpu.matmul %332, %16, %cst_85 {dimension_numbers = #tpu.dot_dimension_numbers<[1], [0], [0], [1], [0, 0, 1, 1], [], []>} : vector<1x16xbf16>, vector<16x64xbf16>, vector<1x64xf32> -> vector<1x64xf32>
    %334 = arith.addf %331, %333 : vector<1x64xf32>
    %335 = vector.extract_strided_slice %329 {offsets = [0, 0], sizes = [1, 48], strides = [1, 1]} : vector<1x64xf32> to vector<1x48xf32>
    %336 = arith.negf %335 : vector<1x48xf32>
    %337 = math.exp %336 : vector<1x48xf32>
    %cst_86 = arith.constant 1.000000e+00 : f32
    %338 = vector.broadcast %cst_86 : f32 to vector<1x48xf32>
    %339 = arith.addf %338, %337 : vector<1x48xf32>
    %340 = arith.divf %338, %339 : vector<1x48xf32>
    %341 = vector.extract_strided_slice %334 {offsets = [0, 0], sizes = [1, 48], strides = [1, 1]} : vector<1x64xf32> to vector<1x48xf32>
    %342 = arith.negf %341 : vector<1x48xf32>
    %343 = math.exp %342 : vector<1x48xf32>
    %cst_87 = arith.constant 1.000000e+00 : f32
    %344 = vector.broadcast %cst_87 : f32 to vector<1x48xf32>
    %345 = arith.addf %344, %343 : vector<1x48xf32>
    %346 = arith.divf %344, %345 : vector<1x48xf32>
    %347 = vector.extract_strided_slice %329 {offsets = [0, 48], sizes = [1, 16], strides = [1, 1]} : vector<1x64xf32> to vector<1x16xf32>
    %348 = math.tanh %347 : vector<1x16xf32>
    %349 = vector.extract_strided_slice %334 {offsets = [0, 48], sizes = [1, 16], strides = [1, 1]} : vector<1x64xf32> to vector<1x16xf32>
    %350 = math.tanh %349 : vector<1x16xf32>
    %351 = vector.extract_strided_slice %340 {offsets = [0, 16], sizes = [1, 16], strides = [1, 1]} : vector<1x48xf32> to vector<1x16xf32>
    %352 = arith.mulf %351, %304 : vector<1x16xf32>
    %353 = vector.extract_strided_slice %340 {offsets = [0, 0], sizes = [1, 16], strides = [1, 1]} : vector<1x48xf32> to vector<1x16xf32>
    %354 = arith.mulf %353, %348 : vector<1x16xf32>
    %355 = arith.addf %352, %354 : vector<1x16xf32>
    %356 = vector.extract_strided_slice %346 {offsets = [0, 16], sizes = [1, 16], strides = [1, 1]} : vector<1x48xf32> to vector<1x16xf32>
    %357 = arith.mulf %356, %309 : vector<1x16xf32>
    %358 = vector.extract_strided_slice %346 {offsets = [0, 0], sizes = [1, 16], strides = [1, 1]} : vector<1x48xf32> to vector<1x16xf32>
    %359 = arith.mulf %358, %350 : vector<1x16xf32>
    %360 = arith.addf %357, %359 : vector<1x16xf32>
    %361 = vector.extract_strided_slice %340 {offsets = [0, 32], sizes = [1, 16], strides = [1, 1]} : vector<1x48xf32> to vector<1x16xf32>
    %362 = math.tanh %355 : vector<1x16xf32>
    %363 = arith.mulf %361, %362 : vector<1x16xf32>
    %364 = vector.extract_strided_slice %346 {offsets = [0, 32], sizes = [1, 16], strides = [1, 1]} : vector<1x48xf32> to vector<1x16xf32>
    %365 = math.tanh %360 : vector<1x16xf32>
    %366 = arith.mulf %364, %365 : vector<1x16xf32>
    %c0_88 = arith.constant 0 : index
    %367 = arith.index_cast %c6_i32 : i32 to index
    %c0_89 = arith.constant 0 : index
    %368 = vector.load %arg6[%c0_88, %367, %c0_89] : memref<1x8x32xf32, #tpu.memory_space<vmem>>, vector<1x1x16xf32>
    %369 = vector.shape_cast %368 : vector<1x1x16xf32> to vector<1x16xf32>
    %370 = vector.shape_cast %363 : vector<1x16xf32> to vector<1x1x16xf32>
    tpu.vector_store %arg6[%c0_88, %367, %c0_89], %370 {strides = array<i32>} : memref<1x8x32xf32, #tpu.memory_space<vmem>>, vector<1x1x16xf32>,
    %c0_90 = arith.constant 0 : index
    %371 = arith.index_cast %324 : i32 to index
    %c16_91 = arith.constant 16 : index
    %372 = vector.load %arg6[%c0_90, %371, %c16_91] : memref<1x8x32xf32, #tpu.memory_space<vmem>>, vector<1x1x16xf32>
    %373 = vector.shape_cast %372 : vector<1x1x16xf32> to vector<1x16xf32>
    %374 = vector.shape_cast %366 : vector<1x16xf32> to vector<1x1x16xf32>
    tpu.vector_store %arg6[%c0_90, %371, %c16_91], %374 {strides = array<i32>} : memref<1x8x32xf32, #tpu.memory_space<vmem>>, vector<1x1x16xf32>,
    %c7_i32_92 = arith.constant 7 : i32
    %c7_i32_93 = arith.constant 7 : i32
    %375 = arith.subi %c7_i32_93, %c7_i32_92 : i32
    %376 = arith.index_cast %c7_i32_92 : i32 to index
    %c0_94 = arith.constant 0 : index
    %377 = vector.load %arg8[%376, %c0_94] : memref<8x128xf32, #tpu.memory_space<vmem>>, vector<1x64xf32>
    %378 = arith.truncf %363 : vector<1x16xf32> to vector<1x16xbf16>
    %cst_95 = arith.constant dense<0.000000e+00> : vector<1x64xf32>
    %379 = tpu.matmul %378, %14, %cst_95 {dimension_numbers = #tpu.dot_dimension_numbers<[1], [0], [0], [1], [0, 0, 1, 1], [], []>} : vector<1x16xbf16>, vector<16x64xbf16>, vector<1x64xf32> -> vector<1x64xf32>
    %380 = arith.addf %377, %379 : vector<1x64xf32>
    %381 = arith.index_cast %375 : i32 to index
    %c64_96 = arith.constant 64 : index
    %382 = vector.load %arg8[%381, %c64_96] : memref<8x128xf32, #tpu.memory_space<vmem>>, vector<1x64xf32>
    %383 = arith.truncf %366 : vector<1x16xf32> to vector<1x16xbf16>
    %cst_97 = arith.constant dense<0.000000e+00> : vector<1x64xf32>
    %384 = tpu.matmul %383, %16, %cst_97 {dimension_numbers = #tpu.dot_dimension_numbers<[1], [0], [0], [1], [0, 0, 1, 1], [], []>} : vector<1x16xbf16>, vector<16x64xbf16>, vector<1x64xf32> -> vector<1x64xf32>
    %385 = arith.addf %382, %384 : vector<1x64xf32>
    %386 = vector.extract_strided_slice %380 {offsets = [0, 0], sizes = [1, 48], strides = [1, 1]} : vector<1x64xf32> to vector<1x48xf32>
    %387 = arith.negf %386 : vector<1x48xf32>
    %388 = math.exp %387 : vector<1x48xf32>
    %cst_98 = arith.constant 1.000000e+00 : f32
    %389 = vector.broadcast %cst_98 : f32 to vector<1x48xf32>
    %390 = arith.addf %389, %388 : vector<1x48xf32>
    %391 = arith.divf %389, %390 : vector<1x48xf32>
    %392 = vector.extract_strided_slice %385 {offsets = [0, 0], sizes = [1, 48], strides = [1, 1]} : vector<1x64xf32> to vector<1x48xf32>
    %393 = arith.negf %392 : vector<1x48xf32>
    %394 = math.exp %393 : vector<1x48xf32>
    %cst_99 = arith.constant 1.000000e+00 : f32
    %395 = vector.broadcast %cst_99 : f32 to vector<1x48xf32>
    %396 = arith.addf %395, %394 : vector<1x48xf32>
    %397 = arith.divf %395, %396 : vector<1x48xf32>
    %398 = vector.extract_strided_slice %380 {offsets = [0, 48], sizes = [1, 16], strides = [1, 1]} : vector<1x64xf32> to vector<1x16xf32>
    %399 = math.tanh %398 : vector<1x16xf32>
    %400 = vector.extract_strided_slice %385 {offsets = [0, 48], sizes = [1, 16], strides = [1, 1]} : vector<1x64xf32> to vector<1x16xf32>
    %401 = math.tanh %400 : vector<1x16xf32>
    %402 = vector.extract_strided_slice %391 {offsets = [0, 16], sizes = [1, 16], strides = [1, 1]} : vector<1x48xf32> to vector<1x16xf32>
    %403 = arith.mulf %402, %355 : vector<1x16xf32>
    %404 = vector.extract_strided_slice %391 {offsets = [0, 0], sizes = [1, 16], strides = [1, 1]} : vector<1x48xf32> to vector<1x16xf32>
    %405 = arith.mulf %404, %399 : vector<1x16xf32>
    %406 = arith.addf %403, %405 : vector<1x16xf32>
    %407 = vector.extract_strided_slice %397 {offsets = [0, 16], sizes = [1, 16], strides = [1, 1]} : vector<1x48xf32> to vector<1x16xf32>
    %408 = arith.mulf %407, %360 : vector<1x16xf32>
    %409 = vector.extract_strided_slice %397 {offsets = [0, 0], sizes = [1, 16], strides = [1, 1]} : vector<1x48xf32> to vector<1x16xf32>
    %410 = arith.mulf %409, %401 : vector<1x16xf32>
    %411 = arith.addf %408, %410 : vector<1x16xf32>
    %412 = vector.extract_strided_slice %391 {offsets = [0, 32], sizes = [1, 16], strides = [1, 1]} : vector<1x48xf32> to vector<1x16xf32>
    %413 = math.tanh %406 : vector<1x16xf32>
    %414 = arith.mulf %412, %413 : vector<1x16xf32>
    %415 = vector.extract_strided_slice %397 {offsets = [0, 32], sizes = [1, 16], strides = [1, 1]} : vector<1x48xf32> to vector<1x16xf32>
    %416 = math.tanh %411 : vector<1x16xf32>
    %417 = arith.mulf %415, %416 : vector<1x16xf32>
    %c0_100 = arith.constant 0 : index
    %418 = arith.index_cast %c7_i32_92 : i32 to index
    %c0_101 = arith.constant 0 : index
    %419 = vector.load %arg6[%c0_100, %418, %c0_101] : memref<1x8x32xf32, #tpu.memory_space<vmem>>, vector<1x1x16xf32>
    %420 = vector.shape_cast %419 : vector<1x1x16xf32> to vector<1x16xf32>
    %421 = vector.shape_cast %414 : vector<1x16xf32> to vector<1x1x16xf32>
    tpu.vector_store %arg6[%c0_100, %418, %c0_101], %421 {strides = array<i32>} : memref<1x8x32xf32, #tpu.memory_space<vmem>>, vector<1x1x16xf32>,
    %c0_102 = arith.constant 0 : index
    %422 = arith.index_cast %375 : i32 to index
    %c16_103 = arith.constant 16 : index
    %423 = vector.load %arg6[%c0_102, %422, %c16_103] : memref<1x8x32xf32, #tpu.memory_space<vmem>>, vector<1x1x16xf32>
    %424 = vector.shape_cast %423 : vector<1x1x16xf32> to vector<1x16xf32>
    %425 = vector.shape_cast %417 : vector<1x16xf32> to vector<1x1x16xf32>
    tpu.vector_store %arg6[%c0_102, %422, %c16_103], %425 {strides = array<i32>} : memref<1x8x32xf32, #tpu.memory_space<vmem>>, vector<1x1x16xf32>,
    %c8_i32 = arith.constant 8 : i32
    %c0_104 = arith.constant 0 : index
    %c0_105 = arith.constant 0 : index
    %c0_106 = arith.constant 0 : index
    %426 = vector.load %arg6[%c0_104, %c0_105, %c0_106] : memref<1x8x32xf32, #tpu.memory_space<vmem>>, vector<1x8x32xf32>
    %427 = vector.shape_cast %426 : vector<1x8x32xf32> to vector<8x32xf32>
    %c0_107 = arith.constant 0 : index
    %c0_108 = arith.constant 0 : index
    %428 = vector.load %arg7[%c0_107, %c0_108] : memref<8x32xf32, #tpu.memory_space<vmem>>, vector<8x32xf32>
    %429 = arith.addf %427, %428 : vector<8x32xf32>
    %c0_109 = arith.constant 0 : index
    %c0_110 = arith.constant 0 : index
    %c0_111 = arith.constant 0 : index
    %430 = vector.load %arg6[%c0_109, %c0_110, %c0_111] : memref<1x8x32xf32, #tpu.memory_space<vmem>>, vector<1x8x32xf32>
    %431 = vector.shape_cast %430 : vector<1x8x32xf32> to vector<8x32xf32>
    %432 = vector.shape_cast %429 : vector<8x32xf32> to vector<1x8x32xf32>
    tpu.vector_store %arg6[%c0_109, %c0_110, %c0_111], %432 {strides = array<i32>} : memref<1x8x32xf32, #tpu.memory_space<vmem>>, vector<1x8x32xf32>,
    %c0_112 = arith.constant 0 : index
    %c0_113 = arith.constant 0 : index
    %433 = vector.load %arg7[%c0_112, %c0_113] : memref<8x32xf32, #tpu.memory_space<vmem>>, vector<8x32xf32>
    tpu.vector_store %arg7[%c0_112, %c0_113], %429 {strides = array<i32>} : memref<8x32xf32, #tpu.memory_space<vmem>>, vector<8x32xf32>,
    return
  }
  func.func @transform_0(%arg0: i32) -> (i32, i32) {
    %c0_i32 = arith.constant 0 : i32
    %c0_i32_0 = arith.constant 0 : i32
    %c0_i32_1 = arith.constant 0 : i32
    return %c0_i32, %c0_i32_0 : i32, i32
  }
  func.func @transform_1(%arg0: i32) -> (i32, i32, i32) {
    %c0_i32 = arith.constant 0 : i32
    %c0_i32_0 = arith.constant 0 : i32
    %c0_i32_1 = arith.constant 0 : i32
    return %arg0, %c0_i32, %c0_i32_0 : i32, i32, i32
  }
  func.func @transform_2(%arg0: i32) -> (i32, i32, i32) {
    %c0_i32 = arith.constant 0 : i32
    %c0_i32_0 = arith.constant 0 : i32
    %c0_i32_1 = arith.constant 0 : i32
    return %arg0, %c0_i32, %c0_i32_0 : i32, i32, i32
  }
  func.func @transform_3(%arg0: i32) -> (i32, i32, i32) {
    %c0_i32 = arith.constant 0 : i32
    %c0_i32_0 = arith.constant 0 : i32
    %c0_i32_1 = arith.constant 0 : i32
    return %arg0, %c0_i32, %c0_i32_0 : i32, i32, i32
  }
  func.func @transform_4(%arg0: i32) -> (i32, i32, i32) {
    %c0_i32 = arith.constant 0 : i32
    %c0_i32_0 = arith.constant 0 : i32
    %c0_i32_1 = arith.constant 0 : i32
    return %arg0, %c0_i32, %c0_i32_0 : i32, i32, i32
  }
  func.func @transform_5(%arg0: i32) -> (i32, i32, i32) {
    %c0_i32 = arith.constant 0 : i32
    %c0_i32_0 = arith.constant 0 : i32
    %c0_i32_1 = arith.constant 0 : i32
    return %arg0, %c0_i32, %c0_i32_0 : i32, i32, i32
  }
}

</mosaic_0001>

<llo_original>
// kernel: tpu_custom_call.1
$region0: #{tpu_custom_call.1}
  #allocation0 [shape = 'u32[]', space=smem, size = 0x4, offset = 0x4, fixed_abs, tag = 'smem constant byte address 0x4 - core index']
  #allocation1 [shape = 'u32[144,128]{1,0:T(1,128)}', space=vmem, size = 0x12000, scoped, tag = 'internal scratch']
  #allocation2 [shape = 'f32[8,32]{1,0:T(8,128)}', space=vmem, size = 0x1000, scoped, tag = 'scratch operand']
  #allocation3 [shape = 'f32[8,128]{1,0:T(8,128)}', space=vmem, size = 0x1000, scoped, tag = 'scratch operand']
  %s0 = inlined_call_operand.hbm [shape: f32[8,32], index: 0, kind: input, shape index: {}]
  %s1 = inlined_call_operand.hbm [shape: bf16[2,32,128], index: 1, kind: input, shape index: {}]
  %s2 = inlined_call_operand.hbm [shape: bf16[2,16,64], index: 2, kind: input, shape index: {}]
  %s3 = inlined_call_operand.hbm [shape: bf16[2,16,64], index: 3, kind: input, shape index: {}]
  %s4 = inlined_call_operand.vmem [shape: f32[2,1,128], index: 4, kind: input, shape index: {}]
  %s5 = inlined_call_operand.hbm [shape: f32[2,8,32], index: 5, kind: output, shape index: {}]
  %s6 = sld [smem:[#allocation0]]
  $region73: #{tpu_custom_call.1} parent=0
    _
  %s8 = ssub.s32 1, %s6
  %s9 = scalar_select 0, %s8, %s6
  $region1: #{tpu_custom_call.1} parent=0
    #allocation4 [shape = 'u8[4096]{0}', space=vmem, size = 0x1000, scoped, tag = 'input window, operand 0, single buffered']
    #allocation5 [shape = 's32[2]{0}', space=sflag, size = 0x8, scoped, tag = 'scoped memory for tpu_custom_call.1']
    #allocation6 [shape = 's32[2]{0}', space=sflag, size = 0x8, scoped, tag = 'scoped memory for tpu_custom_call.1']
    #allocation7 [shape = 'u8[16384]{0}', space=vmem, size = 0x4000, scoped, tag = 'input window, operand 1']
    #allocation8 [shape = 's32[2]{0}', space=sflag, size = 0x8, scoped, tag = 'scoped memory for tpu_custom_call.1']
    #allocation9 [shape = 'u8[8192]{0}', space=vmem, size = 0x2000, scoped, tag = 'input window, operand 2']
    #allocation10 [shape = 'u8[8192]{0}', space=vmem, size = 0x2000, scoped, tag = 'input window, operand 3']
    #allocation11 [shape = 's32[2]{0}', space=sflag, size = 0x8, scoped, tag = 'scoped memory for tpu_custom_call.1']
    #allocation12 [shape = 'u8[8192]{0}', space=vmem, size = 0x2000, scoped, tag = 'output window, operand 0']
    %10 = vsyncpa [#allocation5], 0
    %11 = vsyncpa [#allocation8], 0
    %s12 = scalar_lea.sflag [#allocation8], 1
    %13 = vsyncpa %s12, 0
    %14 = vsyncpa [#allocation11], 0
    %s15 = scalar_lea.sflag [#allocation11], 1
    %16 = vsyncpa %s15, 0
    %17 = vsyncpa [#allocation6], 0
    %s18 = scalar_lea.sflag [#allocation6], 1
    %19 = vsyncpa %s18, 0
    loop: start=0, step=1, limit=4
    $region2: #{tpu_custom_call.1} parent=1 // loop_pre_header
      _
    $region3: #{tpu_custom_call.1} parent=1 // loop_header
      %s21 = sphi 0, %s25
      %p22 = scmp.ge.s32.totalorder %s21, 4
      %s29 = sphi 0, %s29
      %s31 = sphi 0, %s29
      %s32 = sphi 0, %s31
      %s46 = sphi 0, %s32
      %s52 = sphi 0, %s54
      %s55 = sphi 0, %s52
      %s56 = sphi 0, %s55
      %s72 = sphi 0, %s56
      %s78 = sphi 0, %s80
      %s81 = sphi 0, %s78
      %s82 = sphi 0, %s81
      %s98 = sphi 0, %s82
      %s104 = sphi 0, %s106
      %s107 = sphi 0, %s104
      %s108 = sphi 0, %s107
      %s124 = sphi 0, %s108
      %s130 = sphi 0, %s132
      %s133 = sphi 0, %s130
      %s134 = sphi 0, %s133
      %s150 = sphi 0, %s134
      %s156 = sphi 0, %s158
      %s159 = sphi 0, %s156
      %s160 = sphi 0, %s159
      %s176 = sphi 0, %s160
    $region4: #{tpu_custom_call.1} parent=1 // loop_header_branch
      %24 = sbr.rel (%p22) target = $region8
    $region5: #{tpu_custom_call.1} parent=1 // loop_body
      %s26 = ssub.s32 %s21, 1
      %s27 = ssub.s32 %s21, 2
      %s28 = sadd.s32 %s21, 1
      %s30 = sadd.s32 %s29, 1
      %p33 = scmp.eq.s32.totalorder %s21, 1
      %p34 = scmp.ne.s32.totalorder %s29, %s31
      %p35 = scmp.eq.s32.totalorder %s21, 0
      %p36 = por %p34, %p35
      %p37 = scmp.ne.s32.totalorder %s29, %s31
      %p38 = scmp.eq.s32.totalorder %s26, 1
      %p39 = por %p37, %p38
      %p40 = scmp.ne.s32.totalorder %s31, %s32
      %p41 = scmp.eq.s32.totalorder %s26, 0
      %p42 = por %p40, %p41
      %p43 = scmp.ne.s32.totalorder %s31, %s32
      %p44 = scmp.eq.s32.totalorder %s27, 1
      %p45 = por %p43, %p44
      %p47 = scmp.ne.s32.totalorder %s32, %s46
      %p48 = scmp.eq.s32.totalorder %s27, 0
      %p49 = por %p47, %p48
      %s50 = ssub.s32 %s21, %s28
      %p51 = scmp.eq.s32.totalorder %s50, 0
      %s53 = sadd.s32 %s52, 1
      %s54 = scalar_select %p51, %s52, %s53
      %p57 = pneg %p51
      %p58 = scmp.eq.s32.totalorder %s21, 1
      %p59 = por %p57, %p58
      %p60 = scmp.ne.s32.totalorder %s52, %s55
      %p61 = scmp.eq.s32.totalorder %s21, 0
      %p62 = por %p60, %p61
      %p63 = scmp.ne.s32.totalorder %s52, %s55
      %p64 = scmp.eq.s32.totalorder %s26, 1
      %p65 = por %p63, %p64
      %p66 = scmp.ne.s32.totalorder %s55, %s56
      %p67 = scmp.eq.s32.totalorder %s26, 0
      %p68 = por %p66, %p67
      %p69 = scmp.ne.s32.totalorder %s55, %s56
      %p70 = scmp.eq.s32.totalorder %s27, 1
      %p71 = por %p69, %p70
      %p73 = scmp.ne.s32.totalorder %s56, %s72
      %p74 = scmp.eq.s32.totalorder %s27, 0
      %p75 = por %p73, %p74
      %s76 = ssub.s32 %s21, %s28
      %p77 = scmp.eq.s32.totalorder %s76, 0
      %s79 = sadd.s32 %s78, 1
      %s80 = scalar_select %p77, %s78, %s79
      %p83 = pneg %p77
      %p84 = scmp.eq.s32.totalorder %s21, 1
      %p85 = por %p83, %p84
      %p86 = scmp.ne.s32.totalorder %s78, %s81
      %p87 = scmp.eq.s32.totalorder %s21, 0
      %p88 = por %p86, %p87
      %p89 = scmp.ne.s32.totalorder %s78, %s81
      %p90 = scmp.eq.s32.totalorder %s26, 1
      %p91 = por %p89, %p90
      %p92 = scmp.ne.s32.totalorder %s81, %s82
      %p93 = scmp.eq.s32.totalorder %s26, 0
      %p94 = por %p92, %p93
      %p95 = scmp.ne.s32.totalorder %s81, %s82
      %p96 = scmp.eq.s32.totalorder %s27, 1
      %p97 = por %p95, %p96
      %p99 = scmp.ne.s32.totalorder %s82, %s98
      %p100 = scmp.eq.s32.totalorder %s27, 0
      %p101 = por %p99, %p100
      %s102 = ssub.s32 %s21, %s28
      %p103 = scmp.eq.s32.totalorder %s102, 0
      %s105 = sadd.s32 %s104, 1
      %s106 = scalar_select %p103, %s104, %s105
      %p109 = pneg %p103
      %p110 = scmp.eq.s32.totalorder %s21, 1
      %p111 = por %p109, %p110
      %p112 = scmp.ne.s32.totalorder %s104, %s107
      %p113 = scmp.eq.s32.totalorder %s21, 0
      %p114 = por %p112, %p113
      %p115 = scmp.ne.s32.totalorder %s104, %s107
      %p116 = scmp.eq.s32.totalorder %s26, 1
      %p117 = por %p115, %p116
      %p118 = scmp.ne.s32.totalorder %s107, %s108
      %p119 = scmp.eq.s32.totalorder %s26, 0
      %p120 = por %p118, %p119
      %p121 = scmp.ne.s32.totalorder %s107, %s108
      %p122 = scmp.eq.s32.totalorder %s27, 1
      %p123 = por %p121, %p122
      %p125 = scmp.ne.s32.totalorder %s108, %s124
      %p126 = scmp.eq.s32.totalorder %s27, 0
      %p127 = por %p125, %p126
      %s128 = ssub.s32 %s21, %s28
      %p129 = scmp.eq.s32.totalorder %s128, 0
      %s131 = sadd.s32 %s130, 1
      %s132 = scalar_select %p129, %s130, %s131
      %p135 = pneg %p129
      %p136 = scmp.eq.s32.totalorder %s21, 1
      %p137 = por %p135, %p136
      %p138 = scmp.ne.s32.totalorder %s130, %s133
      %p139 = scmp.eq.s32.totalorder %s21, 0
      %p140 = por %p138, %p139
      %p141 = scmp.ne.s32.totalorder %s130, %s133
      %p142 = scmp.eq.s32.totalorder %s26, 1
      %p143 = por %p141, %p142
      %p144 = scmp.ne.s32.totalorder %s133, %s134
      %p145 = scmp.eq.s32.totalorder %s26, 0
      %p146 = por %p144, %p145
      %p147 = scmp.ne.s32.totalorder %s133, %s134
      %p148 = scmp.eq.s32.totalorder %s27, 1
      %p149 = por %p147, %p148
      %p151 = scmp.ne.s32.totalorder %s134, %s150
      %p152 = scmp.eq.s32.totalorder %s27, 0
      %p153 = por %p151, %p152
      %s154 = ssub.s32 %s21, %s28
      %p155 = scmp.eq.s32.totalorder %s154, 0
      %s157 = sadd.s32 %s156, 1
      %s158 = scalar_select %p155, %s156, %s157
      %p161 = pneg %p155
      %p162 = scmp.eq.s32.totalorder %s21, 1
      %p163 = por %p161, %p162
      %p164 = scmp.ne.s32.totalorder %s156, %s159
      %p165 = scmp.eq.s32.totalorder %s21, 0
      %p166 = por %p164, %p165
      %p167 = scmp.ne.s32.totalorder %s156, %s159
      %p168 = scmp.eq.s32.totalorder %s26, 1
      %p169 = por %p167, %p168
      %p170 = scmp.ne.s32.totalorder %s159, %s160
      %p171 = scmp.eq.s32.totalorder %s26, 0
      %p172 = por %p170, %p171
      %p173 = scmp.ne.s32.totalorder %s159, %s160
      %p174 = scmp.eq.s32.totalorder %s27, 1
      %p175 = por %p173, %p174
      %p177 = scmp.ne.s32.totalorder %s160, %s176
      %p178 = scmp.eq.s32.totalorder %s27, 0
      %p179 = por %p177, %p178
      %p180 = scmp.le.s32.totalorder 1, %s21
      %p181 = scmp.lt.s32.totalorder %s21, 3
      %p182 = pnand %p180, %p181
      %p183 = pneg %p182
      // Predicated region
      $region9: #{tpu_custom_call.1} parent=5 // pred_check
        _
      $region10: #{tpu_custom_call.1} parent=5 // pred_check_branch
        %185 = sbr.rel (%p182) target = $region12
      $region11: #{tpu_custom_call.1} parent=5 // pred_region
        %s186 = ssub.s32 %s21, 1
        // Predicated region
        $region13: #{tpu_custom_call.1} parent=11 // pred_check
          %p187 = pneg %p42
        $region14: #{tpu_custom_call.1} parent=11 // pred_check_branch
          %189 = sbr.rel (%p187) target = $region16
        $region15: #{tpu_custom_call.1} parent=11 // pred_region
          %s191 = ssub.s32 128, 128
          %192 = vsyncadd [#allocation5], %s191
          %s194 = sshll.u32 [#allocation4], 4
          %s195 = int_to_ptr.vmem [resolvable:$true] %s194
          %197 = dma.hbm_to_vmem [thread:$0]  %s0, 128, %s195, [#allocation5]
        $region16: #{tpu_custom_call.1} parent=11 // pred_fallthru
          _
      $region12: #{tpu_custom_call.1} parent=5 // pred_fallthru
        _
      %p198 = scmp.lt.s32.totalorder %s21, 2
      // Predicated region
      $region17: #{tpu_custom_call.1} parent=5 // pred_check
        %p199 = pneg %p198
      $region18: #{tpu_custom_call.1} parent=5 // pred_check_branch
        %201 = sbr.rel (%p199) target = $region20
      $region19: #{tpu_custom_call.1} parent=5 // pred_region
        // Predicated region
        $region21: #{tpu_custom_call.1} parent=19 // pred_check
          %p202 = pneg %p62
        $region22: #{tpu_custom_call.1} parent=19 // pred_check_branch
          %204 = sbr.rel (%p202) target = $region24
        $region23: #{tpu_custom_call.1} parent=19 // pred_region
          %s205 = sand.u32 %s21, 1
          %s206 = scalar_lea.sflag [#allocation8], %s205
          %s207 = sand.u32 %s52, 1
          %s208 = smul.addr %s207, 16
          %s209 = scalar_lea.vmem [#allocation7], %s208
          %s211 = ssub.s32 256, 256
          %212 = vsyncadd %s206, %s211
          %s213 = smul.addr %s21, 4
          %s214 = smul.addr %s213, 64
          %s215 = scalar_lea.hbm %s1, %s214
          %s216 = sshll.u32 %s209, 4
          %s217 = int_to_ptr.vmem [resolvable:$true] %s216
          %222 = dma.hbm_to_vmem [thread:$0]  %s215, 256, %s217, %s206, 64, 64, 4
        $region24: #{tpu_custom_call.1} parent=19 // pred_fallthru
          _
        // Predicated region
        $region25: #{tpu_custom_call.1} parent=19 // pred_check
          %p223 = pneg %p88
        $region26: #{tpu_custom_call.1} parent=19 // pred_check_branch
          %225 = sbr.rel (%p223) target = $region28
        $region27: #{tpu_custom_call.1} parent=19 // pred_region
          %s226 = sand.u32 %s21, 1
          %s227 = scalar_lea.sflag [#allocation8], %s226
          %s228 = sand.u32 %s78, 1
          %s229 = smul.addr %s228, 8
          %s230 = scalar_lea.vmem [#allocation9], %s229
          %s232 = ssub.s32 128, 128
          %233 = vsyncadd %s227, %s232
          %s234 = smul.addr %s21, 2
          %s235 = smul.addr %s234, 64
          %s236 = scalar_lea.hbm %s2, %s235
          %s237 = sshll.u32 %s230, 4
          %s238 = int_to_ptr.vmem [resolvable:$true] %s237
          %243 = dma.hbm_to_vmem [thread:$0]  %s236, 128, %s238, %s227, 64, 64, 4
        $region28: #{tpu_custom_call.1} parent=19 // pred_fallthru
          _
        // Predicated region
        $region29: #{tpu_custom_call.1} parent=19 // pred_check
          %p244 = pneg %p114
        $region30: #{tpu_custom_call.1} parent=19 // pred_check_branch
          %246 = sbr.rel (%p244) target = $region32
        $region31: #{tpu_custom_call.1} parent=19 // pred_region
          %s247 = sand.u32 %s104, 1
          %s248 = scalar_lea.sflag [#allocation11], %s247
          %s249 = sand.u32 %s104, 1
          %s250 = smul.addr %s249, 8
          %s251 = scalar_lea.vmem [#allocation10], %s250
          %s253 = ssub.s32 128, 128
          %254 = vsyncadd %s248, %s253
          %s255 = smul.addr %s21, 2
          %s256 = smul.addr %s255, 64
          %s257 = scalar_lea.hbm %s3, %s256
          %s258 = sshll.u32 %s251, 4
          %s259 = int_to_ptr.vmem [resolvable:$true] %s258
          %264 = dma.hbm_to_vmem [thread:$0]  %s257, 128, %s259, %s248, 64, 64, 4
        $region32: #{tpu_custom_call.1} parent=19 // pred_fallthru
          _
        // Predicated region
        $region33: #{tpu_custom_call.1} parent=19 // pred_check
          %p265 = pneg %p140
        $region34: #{tpu_custom_call.1} parent=19 // pred_check_branch
          %267 = sbr.rel (%p265) target = $region36
        $region35: #{tpu_custom_call.1} parent=19 // pred_region
          %p268 = scmp.lt.s32.totalorder %s21, 1
          %s269 = scalar_select %p268, %s21, 1
          %s270 = scalar_lea.vmem %s4, %s269
        $region36: #{tpu_custom_call.1} parent=19 // pred_fallthru
          _
      $region20: #{tpu_custom_call.1} parent=5 // pred_fallthru
        _
      %p271 = scmp.le.s32.totalorder 1, %s21
      %p272 = scmp.lt.s32.totalorder %s21, 3
      %p273 = pnand %p271, %p272
      %p274 = pneg %p273
      // Predicated region
      $region37: #{tpu_custom_call.1} parent=5 // pred_check
        _
      $region38: #{tpu_custom_call.1} parent=5 // pred_check_branch
        %276 = sbr.rel (%p273) target = $region40
      $region39: #{tpu_custom_call.1} parent=5 // pred_region
        %s277 = ssub.s32 %s21, 1
        // Predicated region
        $region41: #{tpu_custom_call.1} parent=39 // pred_check
          %p278 = pneg %p42
        $region42: #{tpu_custom_call.1} parent=39 // pred_check_branch
          %280 = sbr.rel (%p278) target = $region44
        $region43: #{tpu_custom_call.1} parent=39 // pred_region
          %281 = dma.done [#allocation5], 128
        $region44: #{tpu_custom_call.1} parent=39 // pred_fallthru
          _
        %s282 = sand.u32 %s26, 1
        %s283 = scalar_lea.sflag [#allocation8], %s282
        %s284 = sand.u32 %s55, 1
        %s285 = smul.addr %s284, 16
        %s286 = scalar_lea.vmem [#allocation7], %s285
        // Predicated region
        $region45: #{tpu_custom_call.1} parent=39 // pred_check
          %p287 = pneg %p68
        $region46: #{tpu_custom_call.1} parent=39 // pred_check_branch
          %289 = sbr.rel (%p287) target = $region48
        $region47: #{tpu_custom_call.1} parent=39 // pred_region
          %290 = dma.done %s283, 256
        $region48: #{tpu_custom_call.1} parent=39 // pred_fallthru
          _
        %s291 = sand.u32 %s26, 1
        %s292 = scalar_lea.sflag [#allocation8], %s291
        %s293 = sand.u32 %s81, 1
        %s294 = smul.addr %s293, 8
        %s295 = scalar_lea.vmem [#allocation9], %s294
        // Predicated region
        $region49: #{tpu_custom_call.1} parent=39 // pred_check
          %p296 = pneg %p94
        $region50: #{tpu_custom_call.1} parent=39 // pred_check_branch
          %298 = sbr.rel (%p296) target = $region52
        $region51: #{tpu_custom_call.1} parent=39 // pred_region
          %299 = dma.done %s292, 128
        $region52: #{tpu_custom_call.1} parent=39 // pred_fallthru
          _
        %s300 = sand.u32 %s107, 1
        %s301 = scalar_lea.sflag [#allocation11], %s300
        %s302 = sand.u32 %s107, 1
        %s303 = smul.addr %s302, 8
        %s304 = scalar_lea.vmem [#allocation10], %s303
        // Predicated region
        $region53: #{tpu_custom_call.1} parent=39 // pred_check
          %p305 = pneg %p120
        $region54: #{tpu_custom_call.1} parent=39 // pred_check_branch
          %307 = sbr.rel (%p305) target = $region56
        $region55: #{tpu_custom_call.1} parent=39 // pred_region
          %308 = dma.done %s301, 128
        $region56: #{tpu_custom_call.1} parent=39 // pred_fallthru
          _
        %p309 = pneg %p42
        %p310 = pneg %p39
        %s311 = sand.u32 %s26, 1
        %s312 = scalar_lea.sflag [#allocation8], %s311
        %s313 = sand.u32 %s55, 1
        %s314 = smul.addr %s313, 16
        %s315 = scalar_lea.vmem [#allocation7], %s314
        %p316 = pneg %p68
        %p317 = pneg %p65
        %s318 = sand.u32 %s26, 1
        %s319 = scalar_lea.sflag [#allocation8], %s318
        %s320 = sand.u32 %s81, 1
        %s321 = smul.addr %s320, 8
        %s322 = scalar_lea.vmem [#allocation9], %s321
        %p323 = pneg %p94
        %p324 = pneg %p91
        %s325 = sand.u32 %s107, 1
        %s326 = scalar_lea.sflag [#allocation11], %s325
        %s327 = sand.u32 %s107, 1
        %s328 = smul.addr %s327, 8
        %s329 = scalar_lea.vmem [#allocation10], %s328
        %p330 = pneg %p120
        %p331 = pneg %p117
        %p332 = scmp.lt.s32.totalorder %s26, 1
        %s333 = scalar_select %p332, %s26, 1
        %s334 = scalar_lea.vmem %s4, %s333
        %p335 = pneg %p146
        %p336 = pneg %p143
        %p337 = pneg %p172
        %p338 = pneg %p169
        %s339 = sand.u32 %s159, 1
        %s340 = scalar_lea.sflag [#allocation6], %s339
        %s341 = sand.u32 %s159, 1
        %s342 = smul.addr %s341, 8
        %s343 = scalar_lea.vmem [#allocation12], %s342
        %p344 = scmp.lt.s32.totalorder %s26, 1
        %s345 = scalar_select %p344, %s26, 1
        %s346 = scalar_lea.vmem %s4, %s345
        %p348 = scmp.eq.s32.totalorder %s26, 0
        // Predicated region
        $region57: #{tpu_custom_call.1} parent=39 // pred_check
          %p349 = pneg %p348
        $region58: #{tpu_custom_call.1} parent=39 // pred_check_branch
          %351 = sbr.rel (%p349) target = $region60
        $region59: #{tpu_custom_call.1} parent=39 // pred_region
          %v352 = vld [vmem:[#allocation4] sm:$0xff]
          %vm353 = vcmask 261120
          %354 = vst.msk [vmem:[#allocation2] sm:$0xff] %vm353, %v352
        $region60: #{tpu_custom_call.1} parent=39 // pred_fallthru
          _
        %v355 = vld [vmem:[#allocation2] sm:$0xff]
        %v356 = vpack.c.bf16 %v355, %v355
        %v357 = vld [vmem:[%s286] sm:$0xf]
        %v358 = vld [vmem:[%s286 + $0x4] sm:$0xf]
        %v359 = vld [vmem:[%s286 + $0x8] sm:$0xf]
        %v360 = vld [vmem:[%s286 + $0xc] sm:$0xf]
        %v361 = vld [vmem:[%s346] sm:$0x1]
        %v363 = vlaneseq
        %v364 = vshrl.u32 %v363, 7
        %v365 = vsub.s32 0, %v364
        %v366 = vrot.slane %v361, %v365
        %v372 = vunpack.c.l.b16 %v357
        %v373 = vunpack.c.l.b16 %v358
        %v374 = vunpack.c.l.b16 %v359
        %v375 = vunpack.c.l.b16 %v360
        %v376 = vpack.c.b16 %v373, %v372
        %v377 = vpack.c.b16 %v375, %v374
        %vm380 = vcmask 261120
        %v382 = vsel %vm380, %v356, 0
        %384 = vmatprep.subr.bf16.mxu0 0
        %385 = vmatpush1.bf16.msra.mxu0 0
        %386 = vmatprep.subr.bf16.mxu0 0
        %387 = vmatpush1.bf16.msra.mxu0 0
        %388 = vmatprep.subr.bf16.mxu0 0
        %389 = vmatpush1.bf16.msra.mxu0 0
        %390 = vmatprep.subr.bf16.mxu0 0
        %391 = vmatpush1.bf16.msra.mxu0 0
        %392 = vmatprep.subr.bf16.mxu0 0
        %393 = vmatpush1.bf16.msra.mxu0 0
        %394 = vmatprep.subr.bf16.mxu0 0
        %395 = vmatpush1.bf16.msra.mxu0 0
        %396 = vmatprep.subr.bf16.mxu0 0
        %397 = vmatpush1.bf16.msra.mxu0 %v377
        %398 = vmatprep.subr.bf16.mxu0 0
        %399 = vmatpush1.bf16.msra.mxu0 %v376
        %400 = vmatprep.subr.bf16.mxu0 0
        %401 = vmatpush2.bf16.msra.mxu0 0
        %402 = vmatprep.subr.bf16.mxu0 0
        %403 = vmatpush2.bf16.msra.mxu0 0
        %404 = vmatprep.subr.bf16.mxu0 0
        %405 = vmatpush2.bf16.msra.mxu0 0
        %406 = vmatprep.subr.bf16.mxu0 0
        %407 = vmatpush2.bf16.msra.mxu0 0
        %408 = vmatprep.subr.bf16.mxu0 0
        %409 = vmatpush2.bf16.msra.mxu0 0
        %410 = vmatprep.subr.bf16.mxu0 0
        %411 = vmatpush2.bf16.msra.mxu0 0
        %412 = vmatprep.subr.bf16.mxu0 0
        %413 = vmatpush2.bf16.msra.mxu0 0
        %414 = vmatprep.subr.bf16.mxu0 0
        %415 = vmatpush2.bf16.msra.mxu0 0
        %416 = vmatprep.mubr.bf16.mxu0 0
        %417 = vmatmul.mubr.bf16.gmra.mxu0 %v382
        %v418 = vpop.f32.mrf.mxu0
        %v419 = vadd.f32 %v366, %v418
        %v420 = vpop.f32.mrf.mxu0
        %v421 = vpop.f32.mrf.mxu0
        %v422 = vpop.f32.mrf.mxu0
        %423 = vdwg.mxu0
        %424 = vst [vmem:[#allocation3] sm:$0xff] %v419
        %v425 = vld [vmem:[%s295] sm:$0xf]
        %v426 = vld [vmem:[%s295 + $0x4] sm:$0xf]
        %v427 = vld [vmem:[%s304] sm:$0xf]
        %v428 = vld [vmem:[%s304 + $0x4] sm:$0xf]
        %v429 = vld [vmem:[#allocation3] sm:$0x1]
        %v432 = vunpack.c.l.b16 %v425
        %v433 = vunpack.c.l.b16 %v426
        %v434 = vpack.c.b16 %v433, %v432
        %vm436 = vcmask 130048
        %v438 = vsel %vm436, 0, 0
        %440 = vmatprep.subr.bf16.mxu0 0
        %441 = vmatpush1.bf16.msra.mxu0 0
        %442 = vmatprep.subr.bf16.mxu0 0
        %443 = vmatpush1.bf16.msra.mxu0 0
        %444 = vmatprep.subr.bf16.mxu0 0
        %445 = vmatpush1.bf16.msra.mxu0 0
        %446 = vmatprep.subr.bf16.mxu0 0
        %447 = vmatpush1.bf16.msra.mxu0 0
        %448 = vmatprep.subr.bf16.mxu0 0
        %449 = vmatpush1.bf16.msra.mxu0 0
        %450 = vmatprep.subr.bf16.mxu0 0
        %451 = vmatpush1.bf16.msra.mxu0 0
        %452 = vmatprep.subr.bf16.mxu0 0
        %453 = vmatpush1.bf16.msra.mxu0 0
        %454 = vmatprep.subr.bf16.mxu0 0
        %455 = vmatpush1.bf16.msra.mxu0 %v434
        %456 = vmatprep.subr.bf16.mxu0 0
        %457 = vmatpush2.bf16.msra.mxu0 0
        %458 = vmatprep.subr.bf16.mxu0 0
        %459 = vmatpush2.bf16.msra.mxu0 0
        %460 = vmatprep.subr.bf16.mxu0 0
        %461 = vmatpush2.bf16.msra.mxu0 0
        %462 = vmatprep.subr.bf16.mxu0 0
        %463 = vmatpush2.bf16.msra.mxu0 0
        %464 = vmatprep.subr.bf16.mxu0 0
        %465 = vmatpush2.bf16.msra.mxu0 0
        %466 = vmatprep.subr.bf16.mxu0 0
        %467 = vmatpush2.bf16.msra.mxu0 0
        %468 = vmatprep.subr.bf16.mxu0 0
        %469 = vmatpush2.bf16.msra.mxu0 0
        %470 = vmatprep.subr.bf16.mxu0 0
        %471 = vmatpush2.bf16.msra.mxu0 0
        %472 = vmatprep.mubr.bf16.mxu0 0
        %473 = vmatmul.mubr.bf16.gmra.mxu0 %v438
        %v474 = vpop.f32.mrf.mxu0
        %v475 = vadd.f32 0.0, %v474
        %v476 = vpop.f32.mrf.mxu0
        %v477 = vpop.f32.mrf.mxu0
        %v478 = vpop.f32.mrf.mxu0
        %479 = vdwg.mxu0
        %v480 = vadd.f32 %v429, %v475
        %v481 = vld [vmem:[#allocation3 + $0x7] sm:$0x1]
        %v484 = vunpack.c.l.b16 %v427
        %v485 = vunpack.c.l.b16 %v428
        %v486 = vpack.c.b16 %v485, %v484
        %488 = vmatprep.subr.bf16.mxu0 0
        %489 = vmatpush1.bf16.msra.mxu0 0
        %490 = vmatprep.subr.bf16.mxu0 0
        %491 = vmatpush1.bf16.msra.mxu0 0
        %492 = vmatprep.subr.bf16.mxu0 0
        %493 = vmatpush1.bf16.msra.mxu0 0
        %494 = vmatprep.subr.bf16.mxu0 0
        %495 = vmatpush1.bf16.msra.mxu0 0
        %496 = vmatprep.subr.bf16.mxu0 0
        %497 = vmatpush1.bf16.msra.mxu0 0
        %498 = vmatprep.subr.bf16.mxu0 0
        %499 = vmatpush1.bf16.msra.mxu0 0
        %500 = vmatprep.subr.bf16.mxu0 0
        %501 = vmatpush1.bf16.msra.mxu0 0
        %502 = vmatprep.subr.bf16.mxu0 0
        %503 = vmatpush1.bf16.msra.mxu0 %v486
        %504 = vmatprep.subr.bf16.mxu0 0
        %505 = vmatpush2.bf16.msra.mxu0 0
        %506 = vmatprep.subr.bf16.mxu0 0
        %507 = vmatpush2.bf16.msra.mxu0 0
        %508 = vmatprep.subr.bf16.mxu0 0
        %509 = vmatpush2.bf16.msra.mxu0 0
        %510 = vmatprep.subr.bf16.mxu0 0
        %511 = vmatpush2.bf16.msra.mxu0 0
        %512 = vmatprep.subr.bf16.mxu0 0
        %513 = vmatpush2.bf16.msra.mxu0 0
        %514 = vmatprep.subr.bf16.mxu0 0
        %515 = vmatpush2.bf16.msra.mxu0 0
        %516 = vmatprep.subr.bf16.mxu0 0
        %517 = vmatpush2.bf16.msra.mxu0 0
        %518 = vmatprep.subr.bf16.mxu0 0
        %519 = vmatpush2.bf16.msra.mxu0 0
        %520 = vmatprep.mubr.bf16.mxu0 0
        %521 = vmatmul.mubr.bf16.gmra.mxu0 %v438
        %v522 = vpop.f32.mrf.mxu0
        %v523 = vadd.f32 0.0, %v522
        %v524 = vpop.f32.mrf.mxu0
        %v525 = vpop.f32.mrf.mxu0
        %v526 = vpop.f32.mrf.mxu0
        %527 = vdwg.mxu0
        %529 = vrot.lane.b32.xlu0 %v523, 64
        %v530 = vpop.permute.xlu0 %529
        %v532 = vadd.f32 %v481, %v530
        %v533 = vxor.u32 %v480, 2147483648
        %v534 = vmul.f32 %v533, 1.442695
        %v535 = vpow.pop %v534
        %v536 = vadd.f32 %v535, 1.0
        %v537 = vrcp.pop %v536
        %v538 = vmul.f32 1.0, %v537
        %v539 = vxor.u32 %v532, 2147483648
        %v540 = vmul.f32 %v539, 1.442695
        %v541 = vpow.pop %v540
        %v542 = vadd.f32 %v541, 1.0
        %v543 = vrcp.pop %v542
        %v544 = vmul.f32 1.0, %v543
        %v545 = vtanh.pop %v480
        %v546 = vtanh.pop %v532
        %v547 = vmul.f32 %v538, 0.0
        %549 = vrot.lane.b32.xlu0 %v545, 80
        %v550 = vpop.permute.xlu0 %549
        %v552 = vmul.f32 %v538, %v550
        %554 = vrot.lane.b32.xlu0 %v552, 16
        %v555 = vpop.permute.xlu0 %554
        %v557 = vadd.f32 %v547, %v555
        %v558 = vmul.f32 %v544, 0.0
        %560 = vrot.lane.b32.xlu0 %v546, 80
        %v561 = vpop.permute.xlu0 %560
        %v563 = vmul.f32 %v544, %v561
        %565 = vrot.lane.b32.xlu0 %v563, 16
        %v566 = vpop.permute.xlu0 %565
        %v568 = vadd.f32 %v558, %v566
        %v569 = vtanh.pop %v557
        %571 = vrot.lane.b32.xlu0 %v569, 16
        %v572 = vpop.permute.xlu0 %571
        %v574 = vmul.f32 %v538, %v572
        %v575 = vtanh.pop %v568
        %577 = vrot.lane.b32.xlu0 %v575, 16
        %v578 = vpop.permute.xlu0 %577
        %v580 = vmul.f32 %v544, %v578
        %582 = vrot.lane.b32.xlu0 %v574, 96
        %v583 = vpop.permute.xlu0 %582
        %vm585 = vcmask 122880
        %586 = vst.msk [vmem:[%s343] sm:$0x1] %vm585, %v583
        %588 = vrot.lane.b32.xlu0 %v580, 48
        %v589 = vpop.permute.xlu0 %588
        %vm591 = vcmask 254080
        %592 = vst.msk [vmem:[%s343 + $0x7] sm:$0x1] %vm591, %v589
        %v593 = vld [vmem:[#allocation3 + $0x1] sm:$0x1]
        %v594 = vpack.c.bf16 %v574, %v574
        %596 = vrot.lane.b32.xlu0 %v594, 96
        %v597 = vpop.permute.xlu0 %596
        %v599 = vsel %vm436, %v597, 0
        %601 = vmatprep.subr.bf16.mxu0 0
        %602 = vmatpush1.bf16.msra.mxu0 0
        %603 = vmatprep.subr.bf16.mxu0 0
        %604 = vmatpush1.bf16.msra.mxu0 0
        %605 = vmatprep.subr.bf16.mxu0 0
        %606 = vmatpush1.bf16.msra.mxu0 0
        %607 = vmatprep.subr.bf16.mxu0 0
        %608 = vmatpush1.bf16.msra.mxu0 0
        %609 = vmatprep.subr.bf16.mxu0 0
        %610 = vmatpush1.bf16.msra.mxu0 0
        %611 = vmatprep.subr.bf16.mxu0 0
        %612 = vmatpush1.bf16.msra.mxu0 0
        %613 = vmatprep.subr.bf16.mxu0 0
        %614 = vmatpush1.bf16.msra.mxu0 0
        %615 = vmatprep.subr.bf16.mxu0 0
        %616 = vmatpush1.bf16.msra.mxu0 %v434
        %617 = vmatprep.subr.bf16.mxu0 0
        %618 = vmatpush2.bf16.msra.mxu0 0
        %619 = vmatprep.subr.bf16.mxu0 0
        %620 = vmatpush2.bf16.msra.mxu0 0
        %621 = vmatprep.subr.bf16.mxu0 0
        %622 = vmatpush2.bf16.msra.mxu0 0
        %623 = vmatprep.subr.bf16.mxu0 0
        %624 = vmatpush2.bf16.msra.mxu0 0
        %625 = vmatprep.subr.bf16.mxu0 0
        %626 = vmatpush2.bf16.msra.mxu0 0
        %627 = vmatprep.subr.bf16.mxu0 0
        %628 = vmatpush2.bf16.msra.mxu0 0
        %629 = vmatprep.subr.bf16.mxu0 0
        %630 = vmatpush2.bf16.msra.mxu0 0
        %631 = vmatprep.subr.bf16.mxu0 0
        %632 = vmatpush2.bf16.msra.mxu0 0
        %633 = vmatprep.mubr.bf16.mxu0 0
        %634 = vmatmul.mubr.bf16.gmra.mxu0 %v599
        %v635 = vpop.f32.mrf.mxu0
        %v636 = vadd.f32 0.0, %v635
        %v637 = vpop.f32.mrf.mxu0
        %v638 = vpop.f32.mrf.mxu0
        %v639 = vpop.f32.mrf.mxu0
        %640 = vdwg.mxu0
        %v641 = vadd.f32 %v593, %v636
        %v642 = vld [vmem:[#allocation3 + $0x6] sm:$0x1]
        %v643 = vpack.c.bf16 %v580, %v580
        %645 = vrot.lane.b32.xlu0 %v643, 32
        %v646 = vpop.permute.xlu0 %645
        %v648 = vsel %vm436, %v646, 0
        %650 = vmatprep.subr.bf16.mxu0 0
        %651 = vmatpush1.bf16.msra.mxu0 0
        %652 = vmatprep.subr.bf16.mxu0 0
        %653 = vmatpush1.bf16.msra.mxu0 0
        %654 = vmatprep.subr.bf16.mxu0 0
        %655 = vmatpush1.bf16.msra.mxu0 0
        %656 = vmatprep.subr.bf16.mxu0 0
        %657 = vmatpush1.bf16.msra.mxu0 0
        %658 = vmatprep.subr.bf16.mxu0 0
        %659 = vmatpush1.bf16.msra.mxu0 0
        %660 = vmatprep.subr.bf16.mxu0 0
        %661 = vmatpush1.bf16.msra.mxu0 0
        %662 = vmatprep.subr.bf16.mxu0 0
        %663 = vmatpush1.bf16.msra.mxu0 0
        %664 = vmatprep.subr.bf16.mxu0 0
        %665 = vmatpush1.bf16.msra.mxu0 %v486
        %666 = vmatprep.subr.bf16.mxu0 0
        %667 = vmatpush2.bf16.msra.mxu0 0
        %668 = vmatprep.subr.bf16.mxu0 0
        %669 = vmatpush2.bf16.msra.mxu0 0
        %670 = vmatprep.subr.bf16.mxu0 0
        %671 = vmatpush2.bf16.msra.mxu0 0
        %672 = vmatprep.subr.bf16.mxu0 0
        %673 = vmatpush2.bf16.msra.mxu0 0
        %674 = vmatprep.subr.bf16.mxu0 0
        %675 = vmatpush2.bf16.msra.mxu0 0
        %676 = vmatprep.subr.bf16.mxu0 0
        %677 = vmatpush2.bf16.msra.mxu0 0
        %678 = vmatprep.subr.bf16.mxu0 0
        %679 = vmatpush2.bf16.msra.mxu0 0
        %680 = vmatprep.subr.bf16.mxu0 0
        %681 = vmatpush2.bf16.msra.mxu0 0
        %682 = vmatprep.mubr.bf16.mxu0 0
        %683 = vmatmul.mubr.bf16.gmra.mxu0 %v648
        %v684 = vpop.f32.mrf.mxu0
        %v685 = vadd.f32 0.0, %v684
        %v686 = vpop.f32.mrf.mxu0
        %v687 = vpop.f32.mrf.mxu0
        %v688 = vpop.f32.mrf.mxu0
        %689 = vdwg.mxu0
        %691 = vrot.lane.b32.xlu0 %v685, 64
        %v692 = vpop.permute.xlu0 %691
        %v694 = vadd.f32 %v642, %v692
        %v695 = vxor.u32 %v641, 2147483648
        %v696 = vmul.f32 %v695, 1.442695
        %v697 = vpow.pop %v696
        %v698 = vadd.f32 %v697, 1.0
        %v699 = vrcp.pop %v698
        %v700 = vmul.f32 1.0, %v699
        %v701 = vxor.u32 %v694, 2147483648
        %v702 = vmul.f32 %v701, 1.442695
        %v703 = vpow.pop %v702
        %v704 = vadd.f32 %v703, 1.0
        %v705 = vrcp.pop %v704
        %v706 = vmul.f32 1.0, %v705
        %v707 = vtanh.pop %v641
        %v708 = vtanh.pop %v694
        %v709 = vmul.f32 %v700, %v557
        %711 = vrot.lane.b32.xlu0 %v707, 80
        %v712 = vpop.permute.xlu0 %711
        %v714 = vmul.f32 %v700, %v712
        %716 = vrot.lane.b32.xlu0 %v714, 16
        %v717 = vpop.permute.xlu0 %716
        %v719 = vadd.f32 %v709, %v717
        %v720 = vmul.f32 %v706, %v568
        %722 = vrot.lane.b32.xlu0 %v708, 80
        %v723 = vpop.permute.xlu0 %722
        %v725 = vmul.f32 %v706, %v723
        %727 = vrot.lane.b32.xlu0 %v725, 16
        %v728 = vpop.permute.xlu0 %727
        %v730 = vadd.f32 %v720, %v728
        %v731 = vtanh.pop %v719
        %733 = vrot.lane.b32.xlu0 %v731, 16
        %v734 = vpop.permute.xlu0 %733
        %v736 = vmul.f32 %v700, %v734
        %v737 = vtanh.pop %v730
        %739 = vrot.lane.b32.xlu0 %v737, 16
        %v740 = vpop.permute.xlu0 %739
        %v742 = vmul.f32 %v706, %v740
        %744 = vrot.lane.b32.xlu0 %v736, 96
        %v745 = vpop.permute.xlu0 %744
        %747 = vst.msk [vmem:[%s343 + $0x1] sm:$0x1] %vm585, %v745
        %749 = vrot.lane.b32.xlu0 %v742, 48
        %v750 = vpop.permute.xlu0 %749
        %752 = vst.msk [vmem:[%s343 + $0x6] sm:$0x1] %vm591, %v750
        %v753 = vld [vmem:[#allocation3 + $0x2] sm:$0x1]
        %v754 = vpack.c.bf16 %v736, %v736
        %756 = vrot.lane.b32.xlu0 %v754, 96
        %v757 = vpop.permute.xlu0 %756
        %v759 = vsel %vm436, %v757, 0
        %761 = vmatprep.subr.bf16.mxu0 0
        %762 = vmatpush1.bf16.msra.mxu0 0
        %763 = vmatprep.subr.bf16.mxu0 0
        %764 = vmatpush1.bf16.msra.mxu0 0
        %765 = vmatprep.subr.bf16.mxu0 0
        %766 = vmatpush1.bf16.msra.mxu0 0
        %767 = vmatprep.subr.bf16.mxu0 0
        %768 = vmatpush1.bf16.msra.mxu0 0
        %769 = vmatprep.subr.bf16.mxu0 0
        %770 = vmatpush1.bf16.msra.mxu0 0
        %771 = vmatprep.subr.bf16.mxu0 0
        %772 = vmatpush1.bf16.msra.mxu0 0
        %773 = vmatprep.subr.bf16.mxu0 0
        %774 = vmatpush1.bf16.msra.mxu0 0
        %775 = vmatprep.subr.bf16.mxu0 0
        %776 = vmatpush1.bf16.msra.mxu0 %v434
        %777 = vmatprep.subr.bf16.mxu0 0
        %778 = vmatpush2.bf16.msra.mxu0 0
        %779 = vmatprep.subr.bf16.mxu0 0
        %780 = vmatpush2.bf16.msra.mxu0 0
        %781 = vmatprep.subr.bf16.mxu0 0
        %782 = vmatpush2.bf16.msra.mxu0 0
        %783 = vmatprep.subr.bf16.mxu0 0
        %784 = vmatpush2.bf16.msra.mxu0 0
        %785 = vmatprep.subr.bf16.mxu0 0
        %786 = vmatpush2.bf16.msra.mxu0 0
        %787 = vmatprep.subr.bf16.mxu0 0
        %788 = vmatpush2.bf16.msra.mxu0 0
        %789 = vmatprep.subr.bf16.mxu0 0
        %790 = vmatpush2.bf16.msra.mxu0 0
        %791 = vmatprep.subr.bf16.mxu0 0
        %792 = vmatpush2.bf16.msra.mxu0 0
        %793 = vmatprep.mubr.bf16.mxu0 0
        %794 = vmatmul.mubr.bf16.gmra.mxu0 %v759
        %v795 = vpop.f32.mrf.mxu0
        %v796 = vadd.f32 0.0, %v795
        %v797 = vpop.f32.mrf.mxu0
        %v798 = vpop.f32.mrf.mxu0
        %v799 = vpop.f32.mrf.mxu0
        %800 = vdwg.mxu0
        %v801 = vadd.f32 %v753, %v796
        %v802 = vld [vmem:[#allocation3 + $0x5] sm:$0x1]
        %v803 = vpack.c.bf16 %v742, %v742
        %805 = vrot.lane.b32.xlu0 %v803, 32
        %v806 = vpop.permute.xlu0 %805
        %v808 = vsel %vm436, %v806, 0
        %810 = vmatprep.subr.bf16.mxu0 0
        %811 = vmatpush1.bf16.msra.mxu0 0
        %812 = vmatprep.subr.bf16.mxu0 0
        %813 = vmatpush1.bf16.msra.mxu0 0
        %814 = vmatprep.subr.bf16.mxu0 0
        %815 = vmatpush1.bf16.msra.mxu0 0
        %816 = vmatprep.subr.bf16.mxu0 0
        %817 = vmatpush1.bf16.msra.mxu0 0
        %818 = vmatprep.subr.bf16.mxu0 0
        %819 = vmatpush1.bf16.msra.mxu0 0
        %820 = vmatprep.subr.bf16.mxu0 0
        %821 = vmatpush1.bf16.msra.mxu0 0
        %822 = vmatprep.subr.bf16.mxu0 0
        %823 = vmatpush1.bf16.msra.mxu0 0
        %824 = vmatprep.subr.bf16.mxu0 0
        %825 = vmatpush1.bf16.msra.mxu0 %v486
        %826 = vmatprep.subr.bf16.mxu0 0
        %827 = vmatpush2.bf16.msra.mxu0 0
        %828 = vmatprep.subr.bf16.mxu0 0
        %829 = vmatpush2.bf16.msra.mxu0 0
        %830 = vmatprep.subr.bf16.mxu0 0
        %831 = vmatpush2.bf16.msra.mxu0 0
        %832 = vmatprep.subr.bf16.mxu0 0
        %833 = vmatpush2.bf16.msra.mxu0 0
        %834 = vmatprep.subr.bf16.mxu0 0
        %835 = vmatpush2.bf16.msra.mxu0 0
        %836 = vmatprep.subr.bf16.mxu0 0
        %837 = vmatpush2.bf16.msra.mxu0 0
        %838 = vmatprep.subr.bf16.mxu0 0
        %839 = vmatpush2.bf16.msra.mxu0 0
        %840 = vmatprep.subr.bf16.mxu0 0
        %841 = vmatpush2.bf16.msra.mxu0 0
        %842 = vmatprep.mubr.bf16.mxu0 0
        %843 = vmatmul.mubr.bf16.gmra.mxu0 %v808
        %v844 = vpop.f32.mrf.mxu0
        %v845 = vadd.f32 0.0, %v844
        %v846 = vpop.f32.mrf.mxu0
        %v847 = vpop.f32.mrf.mxu0
        %v848 = vpop.f32.mrf.mxu0
        %849 = vdwg.mxu0
        %851 = vrot.lane.b32.xlu0 %v845, 64
        %v852 = vpop.permute.xlu0 %851
        %v854 = vadd.f32 %v802, %v852
        %v855 = vxor.u32 %v801, 2147483648
        %v856 = vmul.f32 %v855, 1.442695
        %v857 = vpow.pop %v856
        %v858 = vadd.f32 %v857, 1.0
        %v859 = vrcp.pop %v858
        %v860 = vmul.f32 1.0, %v859
        %v861 = vxor.u32 %v854, 2147483648
        %v862 = vmul.f32 %v861, 1.442695
        %v863 = vpow.pop %v862
        %v864 = vadd.f32 %v863, 1.0
        %v865 = vrcp.pop %v864
        %v866 = vmul.f32 1.0, %v865
        %v867 = vtanh.pop %v801
        %v868 = vtanh.pop %v854
        %v869 = vmul.f32 %v860, %v719
        %871 = vrot.lane.b32.xlu0 %v867, 80
        %v872 = vpop.permute.xlu0 %871
        %v874 = vmul.f32 %v860, %v872
        %876 = vrot.lane.b32.xlu0 %v874, 16
        %v877 = vpop.permute.xlu0 %876
        %v879 = vadd.f32 %v869, %v877
        %v880 = vmul.f32 %v866, %v730
        %882 = vrot.lane.b32.xlu0 %v868, 80
        %v883 = vpop.permute.xlu0 %882
        %v885 = vmul.f32 %v866, %v883
        %887 = vrot.lane.b32.xlu0 %v885, 16
        %v888 = vpop.permute.xlu0 %887
        %v890 = vadd.f32 %v880, %v888
        %v891 = vtanh.pop %v879
        %893 = vrot.lane.b32.xlu0 %v891, 16
        %v894 = vpop.permute.xlu0 %893
        %v896 = vmul.f32 %v860, %v894
        %v897 = vtanh.pop %v890
        %899 = vrot.lane.b32.xlu0 %v897, 16
        %v900 = vpop.permute.xlu0 %899
        %v902 = vmul.f32 %v866, %v900
        %904 = vrot.lane.b32.xlu0 %v896, 96
        %v905 = vpop.permute.xlu0 %904
        %907 = vst.msk [vmem:[%s343 + $0x2] sm:$0x1] %vm585, %v905
        %909 = vrot.lane.b32.xlu0 %v902, 48
        %v910 = vpop.permute.xlu0 %909
        %912 = vst.msk [vmem:[%s343 + $0x5] sm:$0x1] %vm591, %v910
        %v913 = vld [vmem:[#allocation3 + $0x3] sm:$0x1]
        %v914 = vpack.c.bf16 %v896, %v896
        %916 = vrot.lane.b32.xlu0 %v914, 96
        %v917 = vpop.permute.xlu0 %916
        %v919 = vsel %vm436, %v917, 0
        %921 = vmatprep.subr.bf16.mxu0 0
        %922 = vmatpush1.bf16.msra.mxu0 0
        %923 = vmatprep.subr.bf16.mxu0 0
        %924 = vmatpush1.bf16.msra.mxu0 0
        %925 = vmatprep.subr.bf16.mxu0 0
        %926 = vmatpush1.bf16.msra.mxu0 0
        %927 = vmatprep.subr.bf16.mxu0 0
        %928 = vmatpush1.bf16.msra.mxu0 0
        %929 = vmatprep.subr.bf16.mxu0 0
        %930 = vmatpush1.bf16.msra.mxu0 0
        %931 = vmatprep.subr.bf16.mxu0 0
        %932 = vmatpush1.bf16.msra.mxu0 0
        %933 = vmatprep.subr.bf16.mxu0 0
        %934 = vmatpush1.bf16.msra.mxu0 0
        %935 = vmatprep.subr.bf16.mxu0 0
        %936 = vmatpush1.bf16.msra.mxu0 %v434
        %937 = vmatprep.subr.bf16.mxu0 0
        %938 = vmatpush2.bf16.msra.mxu0 0
        %939 = vmatprep.subr.bf16.mxu0 0
        %940 = vmatpush2.bf16.msra.mxu0 0
        %941 = vmatprep.subr.bf16.mxu0 0
        %942 = vmatpush2.bf16.msra.mxu0 0
        %943 = vmatprep.subr.bf16.mxu0 0
        %944 = vmatpush2.bf16.msra.mxu0 0
        %945 = vmatprep.subr.bf16.mxu0 0
        %946 = vmatpush2.bf16.msra.mxu0 0
        %947 = vmatprep.subr.bf16.mxu0 0
        %948 = vmatpush2.bf16.msra.mxu0 0
        %949 = vmatprep.subr.bf16.mxu0 0
        %950 = vmatpush2.bf16.msra.mxu0 0
        %951 = vmatprep.subr.bf16.mxu0 0
        %952 = vmatpush2.bf16.msra.mxu0 0
        %953 = vmatprep.mubr.bf16.mxu0 0
        %954 = vmatmul.mubr.bf16.gmra.mxu0 %v919
        %v955 = vpop.f32.mrf.mxu0
        %v956 = vadd.f32 0.0, %v955
        %v957 = vpop.f32.mrf.mxu0
        %v958 = vpop.f32.mrf.mxu0
        %v959 = vpop.f32.mrf.mxu0
        %960 = vdwg.mxu0
        %v961 = vadd.f32 %v913, %v956
        %v962 = vld [vmem:[#allocation3 + $0x4] sm:$0x1]
        %v963 = vpack.c.bf16 %v902, %v902
        %965 = vrot.lane.b32.xlu0 %v963, 32
        %v966 = vpop.permute.xlu0 %965
        %v968 = vsel %vm436, %v966, 0
        %970 = vmatprep.subr.bf16.mxu0 0
        %971 = vmatpush1.bf16.msra.mxu0 0
        %972 = vmatprep.subr.bf16.mxu0 0
        %973 = vmatpush1.bf16.msra.mxu0 0
        %974 = vmatprep.subr.bf16.mxu0 0
        %975 = vmatpush1.bf16.msra.mxu0 0
        %976 = vmatprep.subr.bf16.mxu0 0
        %977 = vmatpush1.bf16.msra.mxu0 0
        %978 = vmatprep.subr.bf16.mxu0 0
        %979 = vmatpush1.bf16.msra.mxu0 0
        %980 = vmatprep.subr.bf16.mxu0 0
        %981 = vmatpush1.bf16.msra.mxu0 0
        %982 = vmatprep.subr.bf16.mxu0 0
        %983 = vmatpush1.bf16.msra.mxu0 0
        %984 = vmatprep.subr.bf16.mxu0 0
        %985 = vmatpush1.bf16.msra.mxu0 %v486
        %986 = vmatprep.subr.bf16.mxu0 0
        %987 = vmatpush2.bf16.msra.mxu0 0
        %988 = vmatprep.subr.bf16.mxu0 0
        %989 = vmatpush2.bf16.msra.mxu0 0
        %990 = vmatprep.subr.bf16.mxu0 0
        %991 = vmatpush2.bf16.msra.mxu0 0
        %992 = vmatprep.subr.bf16.mxu0 0
        %993 = vmatpush2.bf16.msra.mxu0 0
        %994 = vmatprep.subr.bf16.mxu0 0
        %995 = vmatpush2.bf16.msra.mxu0 0
        %996 = vmatprep.subr.bf16.mxu0 0
        %997 = vmatpush2.bf16.msra.mxu0 0
        %998 = vmatprep.subr.bf16.mxu0 0
        %999 = vmatpush2.bf16.msra.mxu0 0
        %1000 = vmatprep.subr.bf16.mxu0 0
        %1001 = vmatpush2.bf16.msra.mxu0 0
        %1002 = vmatprep.mubr.bf16.mxu0 0
        %1003 = vmatmul.mubr.bf16.gmra.mxu0 %v968
        %v1004 = vpop.f32.mrf.mxu0
        %v1005 = vadd.f32 0.0, %v1004
        %v1006 = vpop.f32.mrf.mxu0
        %v1007 = vpop.f32.mrf.mxu0
        %v1008 = vpop.f32.mrf.mxu0
        %1009 = vdwg.mxu0
        %1011 = vrot.lane.b32.xlu0 %v1005, 64
        %v1012 = vpop.permute.xlu0 %1011
        %v1014 = vadd.f32 %v962, %v1012
        %v1015 = vxor.u32 %v961, 2147483648
        %v1016 = vmul.f32 %v1015, 1.442695
        %v1017 = vpow.pop %v1016
        %v1018 = vadd.f32 %v1017, 1.0
        %v1019 = vrcp.pop %v1018
        %v1020 = vmul.f32 1.0, %v1019
        %v1021 = vxor.u32 %v1014, 2147483648
        %v1022 = vmul.f32 %v1021, 1.442695
        %v1023 = vpow.pop %v1022
        %v1024 = vadd.f32 %v1023, 1.0
        %v1025 = vrcp.pop %v1024
        %v1026 = vmul.f32 1.0, %v1025
        %v1027 = vtanh.pop %v961
        %v1028 = vtanh.pop %v1014
        %v1029 = vmul.f32 %v1020, %v879
        %1031 = vrot.lane.b32.xlu0 %v1027, 80
        %v1032 = vpop.permute.xlu0 %1031
        %v1034 = vmul.f32 %v1020, %v1032
        %1036 = vrot.lane.b32.xlu0 %v1034, 16
        %v1037 = vpop.permute.xlu0 %1036
        %v1039 = vadd.f32 %v1029, %v1037
        %v1040 = vmul.f32 %v1026, %v890
        %1042 = vrot.lane.b32.xlu0 %v1028, 80
        %v1043 = vpop.permute.xlu0 %1042
        %v1045 = vmul.f32 %v1026, %v1043
        %1047 = vrot.lane.b32.xlu0 %v1045, 16
        %v1048 = vpop.permute.xlu0 %1047
        %v1050 = vadd.f32 %v1040, %v1048
        %v1051 = vtanh.pop %v1039
        %1053 = vrot.lane.b32.xlu0 %v1051, 16
        %v1054 = vpop.permute.xlu0 %1053
        %v1056 = vmul.f32 %v1020, %v1054
        %v1057 = vtanh.pop %v1050
        %1059 = vrot.lane.b32.xlu0 %v1057, 16
        %v1060 = vpop.permute.xlu0 %1059
        %v1062 = vmul.f32 %v1026, %v1060
        %1064 = vrot.lane.b32.xlu0 %v1056, 96
        %v1065 = vpop.permute.xlu0 %1064
        %1067 = vst.msk [vmem:[%s343 + $0x3] sm:$0x1] %vm585, %v1065
        %1069 = vrot.lane.b32.xlu0 %v1062, 48
        %v1070 = vpop.permute.xlu0 %1069
        %1072 = vst.msk [vmem:[%s343 + $0x4] sm:$0x1] %vm591, %v1070
        %v1073 = vld [vmem:[#allocation3 + $0x4] sm:$0x1]
        %v1074 = vpack.c.bf16 %v1056, %v1056
        %1076 = vrot.lane.b32.xlu0 %v1074, 96
        %v1077 = vpop.permute.xlu0 %1076
        %v1079 = vsel %vm436, %v1077, 0
        %1081 = vmatprep.subr.bf16.mxu0 0
        %1082 = vmatpush1.bf16.msra.mxu0 0
        %1083 = vmatprep.subr.bf16.mxu0 0
        %1084 = vmatpush1.bf16.msra.mxu0 0
        %1085 = vmatprep.subr.bf16.mxu0 0
        %1086 = vmatpush1.bf16.msra.mxu0 0
        %1087 = vmatprep.subr.bf16.mxu0 0
        %1088 = vmatpush1.bf16.msra.mxu0 0
        %1089 = vmatprep.subr.bf16.mxu0 0
        %1090 = vmatpush1.bf16.msra.mxu0 0
        %1091 = vmatprep.subr.bf16.mxu0 0
        %1092 = vmatpush1.bf16.msra.mxu0 0
        %1093 = vmatprep.subr.bf16.mxu0 0
        %1094 = vmatpush1.bf16.msra.mxu0 0
        %1095 = vmatprep.subr.bf16.mxu0 0
        %1096 = vmatpush1.bf16.msra.mxu0 %v434
        %1097 = vmatprep.subr.bf16.mxu0 0
        %1098 = vmatpush2.bf16.msra.mxu0 0
        %1099 = vmatprep.subr.bf16.mxu0 0
        %1100 = vmatpush2.bf16.msra.mxu0 0
        %1101 = vmatprep.subr.bf16.mxu0 0
        %1102 = vmatpush2.bf16.msra.mxu0 0
        %1103 = vmatprep.subr.bf16.mxu0 0
        %1104 = vmatpush2.bf16.msra.mxu0 0
        %1105 = vmatprep.subr.bf16.mxu0 0
        %1106 = vmatpush2.bf16.msra.mxu0 0
        %1107 = vmatprep.subr.bf16.mxu0 0
        %1108 = vmatpush2.bf16.msra.mxu0 0
        %1109 = vmatprep.subr.bf16.mxu0 0
        %1110 = vmatpush2.bf16.msra.mxu0 0
        %1111 = vmatprep.subr.bf16.mxu0 0
        %1112 = vmatpush2.bf16.msra.mxu0 0
        %1113 = vmatprep.mubr.bf16.mxu0 0
        %1114 = vmatmul.mubr.bf16.gmra.mxu0 %v1079
        %v1115 = vpop.f32.mrf.mxu0
        %v1116 = vadd.f32 0.0, %v1115
        %v1117 = vpop.f32.mrf.mxu0
        %v1118 = vpop.f32.mrf.mxu0
        %v1119 = vpop.f32.mrf.mxu0
        %1120 = vdwg.mxu0
        %v1121 = vadd.f32 %v1073, %v1116
        %v1122 = vld [vmem:[#allocation3 + $0x3] sm:$0x1]
        %v1123 = vpack.c.bf16 %v1062, %v1062
        %1125 = vrot.lane.b32.xlu0 %v1123, 32
        %v1126 = vpop.permute.xlu0 %1125
        %v1128 = vsel %vm436, %v1126, 0
        %1130 = vmatprep.subr.bf16.mxu0 0
        %1131 = vmatpush1.bf16.msra.mxu0 0
        %1132 = vmatprep.subr.bf16.mxu0 0
        %1133 = vmatpush1.bf16.msra.mxu0 0
        %1134 = vmatprep.subr.bf16.mxu0 0
        %1135 = vmatpush1.bf16.msra.mxu0 0
        %1136 = vmatprep.subr.bf16.mxu0 0
        %1137 = vmatpush1.bf16.msra.mxu0 0
        %1138 = vmatprep.subr.bf16.mxu0 0
        %1139 = vmatpush1.bf16.msra.mxu0 0
        %1140 = vmatprep.subr.bf16.mxu0 0
        %1141 = vmatpush1.bf16.msra.mxu0 0
        %1142 = vmatprep.subr.bf16.mxu0 0
        %1143 = vmatpush1.bf16.msra.mxu0 0
        %1144 = vmatprep.subr.bf16.mxu0 0
        %1145 = vmatpush1.bf16.msra.mxu0 %v486
        %1146 = vmatprep.subr.bf16.mxu0 0
        %1147 = vmatpush2.bf16.msra.mxu0 0
        %1148 = vmatprep.subr.bf16.mxu0 0
        %1149 = vmatpush2.bf16.msra.mxu0 0
        %1150 = vmatprep.subr.bf16.mxu0 0
        %1151 = vmatpush2.bf16.msra.mxu0 0
        %1152 = vmatprep.subr.bf16.mxu0 0
        %1153 = vmatpush2.bf16.msra.mxu0 0
        %1154 = vmatprep.subr.bf16.mxu0 0
        %1155 = vmatpush2.bf16.msra.mxu0 0
        %1156 = vmatprep.subr.bf16.mxu0 0
        %1157 = vmatpush2.bf16.msra.mxu0 0
        %1158 = vmatprep.subr.bf16.mxu0 0
        %1159 = vmatpush2.bf16.msra.mxu0 0
        %1160 = vmatprep.subr.bf16.mxu0 0
        %1161 = vmatpush2.bf16.msra.mxu0 0
        %1162 = vmatprep.mubr.bf16.mxu0 0
        %1163 = vmatmul.mubr.bf16.gmra.mxu0 %v1128
        %v1164 = vpop.f32.mrf.mxu0
        %v1165 = vadd.f32 0.0, %v1164
        %v1166 = vpop.f32.mrf.mxu0
        %v1167 = vpop.f32.mrf.mxu0
        %v1168 = vpop.f32.mrf.mxu0
        %1169 = vdwg.mxu0
        %1171 = vrot.lane.b32.xlu0 %v1165, 64
        %v1172 = vpop.permute.xlu0 %1171
        %v1174 = vadd.f32 %v1122, %v1172
        %v1175 = vxor.u32 %v1121, 2147483648
        %v1176 = vmul.f32 %v1175, 1.442695
        %v1177 = vpow.pop %v1176
        %v1178 = vadd.f32 %v1177, 1.0
        %v1179 = vrcp.pop %v1178
        %v1180 = vmul.f32 1.0, %v1179
        %v1181 = vxor.u32 %v1174, 2147483648
        %v1182 = vmul.f32 %v1181, 1.442695
        %v1183 = vpow.pop %v1182
        %v1184 = vadd.f32 %v1183, 1.0
        %v1185 = vrcp.pop %v1184
        %v1186 = vmul.f32 1.0, %v1185
        %v1187 = vtanh.pop %v1121
        %v1188 = vtanh.pop %v1174
        %v1189 = vmul.f32 %v1180, %v1039
        %1191 = vrot.lane.b32.xlu0 %v1187, 80
        %v1192 = vpop.permute.xlu0 %1191
        %v1194 = vmul.f32 %v1180, %v1192
        %1196 = vrot.lane.b32.xlu0 %v1194, 16
        %v1197 = vpop.permute.xlu0 %1196
        %v1199 = vadd.f32 %v1189, %v1197
        %v1200 = vmul.f32 %v1186, %v1050
        %1202 = vrot.lane.b32.xlu0 %v1188, 80
        %v1203 = vpop.permute.xlu0 %1202
        %v1205 = vmul.f32 %v1186, %v1203
        %1207 = vrot.lane.b32.xlu0 %v1205, 16
        %v1208 = vpop.permute.xlu0 %1207
        %v1210 = vadd.f32 %v1200, %v1208
        %v1211 = vtanh.pop %v1199
        %1213 = vrot.lane.b32.xlu0 %v1211, 16
        %v1214 = vpop.permute.xlu0 %1213
        %v1216 = vmul.f32 %v1180, %v1214
        %v1217 = vtanh.pop %v1210
        %1219 = vrot.lane.b32.xlu0 %v1217, 16
        %v1220 = vpop.permute.xlu0 %1219
        %v1222 = vmul.f32 %v1186, %v1220
        %1224 = vrot.lane.b32.xlu0 %v1216, 96
        %v1225 = vpop.permute.xlu0 %1224
        %1227 = vst.msk [vmem:[%s343 + $0x4] sm:$0x1] %vm585, %v1225
        %1229 = vrot.lane.b32.xlu0 %v1222, 48
        %v1230 = vpop.permute.xlu0 %1229
        %1232 = vst.msk [vmem:[%s343 + $0x3] sm:$0x1] %vm591, %v1230
        %v1233 = vld [vmem:[#allocation3 + $0x5] sm:$0x1]
        %v1234 = vpack.c.bf16 %v1216, %v1216
        %1236 = vrot.lane.b32.xlu0 %v1234, 96
        %v1237 = vpop.permute.xlu0 %1236
        %v1239 = vsel %vm436, %v1237, 0
        %1241 = vmatprep.subr.bf16.mxu0 0
        %1242 = vmatpush1.bf16.msra.mxu0 0
        %1243 = vmatprep.subr.bf16.mxu0 0
        %1244 = vmatpush1.bf16.msra.mxu0 0
        %1245 = vmatprep.subr.bf16.mxu0 0
        %1246 = vmatpush1.bf16.msra.mxu0 0
        %1247 = vmatprep.subr.bf16.mxu0 0
        %1248 = vmatpush1.bf16.msra.mxu0 0
        %1249 = vmatprep.subr.bf16.mxu0 0
        %1250 = vmatpush1.bf16.msra.mxu0 0
        %1251 = vmatprep.subr.bf16.mxu0 0
        %1252 = vmatpush1.bf16.msra.mxu0 0
        %1253 = vmatprep.subr.bf16.mxu0 0
        %1254 = vmatpush1.bf16.msra.mxu0 0
        %1255 = vmatprep.subr.bf16.mxu0 0
        %1256 = vmatpush1.bf16.msra.mxu0 %v434
        %1257 = vmatprep.subr.bf16.mxu0 0
        %1258 = vmatpush2.bf16.msra.mxu0 0
        %1259 = vmatprep.subr.bf16.mxu0 0
        %1260 = vmatpush2.bf16.msra.mxu0 0
        %1261 = vmatprep.subr.bf16.mxu0 0
        %1262 = vmatpush2.bf16.msra.mxu0 0
        %1263 = vmatprep.subr.bf16.mxu0 0
        %1264 = vmatpush2.bf16.msra.mxu0 0
        %1265 = vmatprep.subr.bf16.mxu0 0
        %1266 = vmatpush2.bf16.msra.mxu0 0
        %1267 = vmatprep.subr.bf16.mxu0 0
        %1268 = vmatpush2.bf16.msra.mxu0 0
        %1269 = vmatprep.subr.bf16.mxu0 0
        %1270 = vmatpush2.bf16.msra.mxu0 0
        %1271 = vmatprep.subr.bf16.mxu0 0
        %1272 = vmatpush2.bf16.msra.mxu0 0
        %1273 = vmatprep.mubr.bf16.mxu0 0
        %1274 = vmatmul.mubr.bf16.gmra.mxu0 %v1239
        %v1275 = vpop.f32.mrf.mxu0
        %v1276 = vadd.f32 0.0, %v1275
        %v1277 = vpop.f32.mrf.mxu0
        %v1278 = vpop.f32.mrf.mxu0
        %v1279 = vpop.f32.mrf.mxu0
        %1280 = vdwg.mxu0
        %v1281 = vadd.f32 %v1233, %v1276
        %v1282 = vld [vmem:[#allocation3 + $0x2] sm:$0x1]
        %v1283 = vpack.c.bf16 %v1222, %v1222
        %1285 = vrot.lane.b32.xlu0 %v1283, 32
        %v1286 = vpop.permute.xlu0 %1285
        %v1288 = vsel %vm436, %v1286, 0
        %1290 = vmatprep.subr.bf16.mxu0 0
        %1291 = vmatpush1.bf16.msra.mxu0 0
        %1292 = vmatprep.subr.bf16.mxu0 0
        %1293 = vmatpush1.bf16.msra.mxu0 0
        %1294 = vmatprep.subr.bf16.mxu0 0
        %1295 = vmatpush1.bf16.msra.mxu0 0
        %1296 = vmatprep.subr.bf16.mxu0 0
        %1297 = vmatpush1.bf16.msra.mxu0 0
        %1298 = vmatprep.subr.bf16.mxu0 0
        %1299 = vmatpush1.bf16.msra.mxu0 0
        %1300 = vmatprep.subr.bf16.mxu0 0
        %1301 = vmatpush1.bf16.msra.mxu0 0
        %1302 = vmatprep.subr.bf16.mxu0 0
        %1303 = vmatpush1.bf16.msra.mxu0 0
        %1304 = vmatprep.subr.bf16.mxu0 0
        %1305 = vmatpush1.bf16.msra.mxu0 %v486
        %1306 = vmatprep.subr.bf16.mxu0 0
        %1307 = vmatpush2.bf16.msra.mxu0 0
        %1308 = vmatprep.subr.bf16.mxu0 0
        %1309 = vmatpush2.bf16.msra.mxu0 0
        %1310 = vmatprep.subr.bf16.mxu0 0
        %1311 = vmatpush2.bf16.msra.mxu0 0
        %1312 = vmatprep.subr.bf16.mxu0 0
        %1313 = vmatpush2.bf16.msra.mxu0 0
        %1314 = vmatprep.subr.bf16.mxu0 0
        %1315 = vmatpush2.bf16.msra.mxu0 0
        %1316 = vmatprep.subr.bf16.mxu0 0
        %1317 = vmatpush2.bf16.msra.mxu0 0
        %1318 = vmatprep.subr.bf16.mxu0 0
        %1319 = vmatpush2.bf16.msra.mxu0 0
        %1320 = vmatprep.subr.bf16.mxu0 0
        %1321 = vmatpush2.bf16.msra.mxu0 0
        %1322 = vmatprep.mubr.bf16.mxu0 0
        %1323 = vmatmul.mubr.bf16.gmra.mxu0 %v1288
        %v1324 = vpop.f32.mrf.mxu0
        %v1325 = vadd.f32 0.0, %v1324
        %v1326 = vpop.f32.mrf.mxu0
        %v1327 = vpop.f32.mrf.mxu0
        %v1328 = vpop.f32.mrf.mxu0
        %1329 = vdwg.mxu0
        %1331 = vrot.lane.b32.xlu0 %v1325, 64
        %v1332 = vpop.permute.xlu0 %1331
        %v1334 = vadd.f32 %v1282, %v1332
        %v1335 = vxor.u32 %v1281, 2147483648
        %v1336 = vmul.f32 %v1335, 1.442695
        %v1337 = vpow.pop %v1336
        %v1338 = vadd.f32 %v1337, 1.0
        %v1339 = vrcp.pop %v1338
        %v1340 = vmul.f32 1.0, %v1339
        %v1341 = vxor.u32 %v1334, 2147483648
        %v1342 = vmul.f32 %v1341, 1.442695
        %v1343 = vpow.pop %v1342
        %v1344 = vadd.f32 %v1343, 1.0
        %v1345 = vrcp.pop %v1344
        %v1346 = vmul.f32 1.0, %v1345
        %v1347 = vtanh.pop %v1281
        %v1348 = vtanh.pop %v1334
        %v1349 = vmul.f32 %v1340, %v1199
        %1351 = vrot.lane.b32.xlu0 %v1347, 80
        %v1352 = vpop.permute.xlu0 %1351
        %v1354 = vmul.f32 %v1340, %v1352
        %1356 = vrot.lane.b32.xlu0 %v1354, 16
        %v1357 = vpop.permute.xlu0 %1356
        %v1359 = vadd.f32 %v1349, %v1357
        %v1360 = vmul.f32 %v1346, %v1210
        %1362 = vrot.lane.b32.xlu0 %v1348, 80
        %v1363 = vpop.permute.xlu0 %1362
        %v1365 = vmul.f32 %v1346, %v1363
        %1367 = vrot.lane.b32.xlu0 %v1365, 16
        %v1368 = vpop.permute.xlu0 %1367
        %v1370 = vadd.f32 %v1360, %v1368
        %v1371 = vtanh.pop %v1359
        %1373 = vrot.lane.b32.xlu0 %v1371, 16
        %v1374 = vpop.permute.xlu0 %1373
        %v1376 = vmul.f32 %v1340, %v1374
        %v1377 = vtanh.pop %v1370
        %1379 = vrot.lane.b32.xlu0 %v1377, 16
        %v1380 = vpop.permute.xlu0 %1379
        %v1382 = vmul.f32 %v1346, %v1380
        %1384 = vrot.lane.b32.xlu0 %v1376, 96
        %v1385 = vpop.permute.xlu0 %1384
        %1387 = vst.msk [vmem:[%s343 + $0x5] sm:$0x1] %vm585, %v1385
        %1389 = vrot.lane.b32.xlu0 %v1382, 48
        %v1390 = vpop.permute.xlu0 %1389
        %1392 = vst.msk [vmem:[%s343 + $0x2] sm:$0x1] %vm591, %v1390
        %v1393 = vld [vmem:[#allocation3 + $0x6] sm:$0x1]
        %v1394 = vpack.c.bf16 %v1376, %v1376
        %1396 = vrot.lane.b32.xlu0 %v1394, 96
        %v1397 = vpop.permute.xlu0 %1396
        %v1399 = vsel %vm436, %v1397, 0
        %1401 = vmatprep.subr.bf16.mxu0 0
        %1402 = vmatpush1.bf16.msra.mxu0 0
        %1403 = vmatprep.subr.bf16.mxu0 0
        %1404 = vmatpush1.bf16.msra.mxu0 0
        %1405 = vmatprep.subr.bf16.mxu0 0
        %1406 = vmatpush1.bf16.msra.mxu0 0
        %1407 = vmatprep.subr.bf16.mxu0 0
        %1408 = vmatpush1.bf16.msra.mxu0 0
        %1409 = vmatprep.subr.bf16.mxu0 0
        %1410 = vmatpush1.bf16.msra.mxu0 0
        %1411 = vmatprep.subr.bf16.mxu0 0
        %1412 = vmatpush1.bf16.msra.mxu0 0
        %1413 = vmatprep.subr.bf16.mxu0 0
        %1414 = vmatpush1.bf16.msra.mxu0 0
        %1415 = vmatprep.subr.bf16.mxu0 0
        %1416 = vmatpush1.bf16.msra.mxu0 %v434
        %1417 = vmatprep.subr.bf16.mxu0 0
        %1418 = vmatpush2.bf16.msra.mxu0 0
        %1419 = vmatprep.subr.bf16.mxu0 0
        %1420 = vmatpush2.bf16.msra.mxu0 0
        %1421 = vmatprep.subr.bf16.mxu0 0
        %1422 = vmatpush2.bf16.msra.mxu0 0
        %1423 = vmatprep.subr.bf16.mxu0 0
        %1424 = vmatpush2.bf16.msra.mxu0 0
        %1425 = vmatprep.subr.bf16.mxu0 0
        %1426 = vmatpush2.bf16.msra.mxu0 0
        %1427 = vmatprep.subr.bf16.mxu0 0
        %1428 = vmatpush2.bf16.msra.mxu0 0
        %1429 = vmatprep.subr.bf16.mxu0 0
        %1430 = vmatpush2.bf16.msra.mxu0 0
        %1431 = vmatprep.subr.bf16.mxu0 0
        %1432 = vmatpush2.bf16.msra.mxu0 0
        %1433 = vmatprep.mubr.bf16.mxu0 0
        %1434 = vmatmul.mubr.bf16.gmra.mxu0 %v1399
        %v1435 = vpop.f32.mrf.mxu0
        %v1436 = vadd.f32 0.0, %v1435
        %v1437 = vpop.f32.mrf.mxu0
        %v1438 = vpop.f32.mrf.mxu0
        %v1439 = vpop.f32.mrf.mxu0
        %1440 = vdwg.mxu0
        %v1441 = vadd.f32 %v1393, %v1436
        %v1442 = vld [vmem:[#allocation3 + $0x1] sm:$0x1]
        %v1443 = vpack.c.bf16 %v1382, %v1382
        %1445 = vrot.lane.b32.xlu0 %v1443, 32
        %v1446 = vpop.permute.xlu0 %1445
        %v1448 = vsel %vm436, %v1446, 0
        %1450 = vmatprep.subr.bf16.mxu0 0
        %1451 = vmatpush1.bf16.msra.mxu0 0
        %1452 = vmatprep.subr.bf16.mxu0 0
        %1453 = vmatpush1.bf16.msra.mxu0 0
        %1454 = vmatprep.subr.bf16.mxu0 0
        %1455 = vmatpush1.bf16.msra.mxu0 0
        %1456 = vmatprep.subr.bf16.mxu0 0
        %1457 = vmatpush1.bf16.msra.mxu0 0
        %1458 = vmatprep.subr.bf16.mxu0 0
        %1459 = vmatpush1.bf16.msra.mxu0 0
        %1460 = vmatprep.subr.bf16.mxu0 0
        %1461 = vmatpush1.bf16.msra.mxu0 0
        %1462 = vmatprep.subr.bf16.mxu0 0
        %1463 = vmatpush1.bf16.msra.mxu0 0
        %1464 = vmatprep.subr.bf16.mxu0 0
        %1465 = vmatpush1.bf16.msra.mxu0 %v486
        %1466 = vmatprep.subr.bf16.mxu0 0
        %1467 = vmatpush2.bf16.msra.mxu0 0
        %1468 = vmatprep.subr.bf16.mxu0 0
        %1469 = vmatpush2.bf16.msra.mxu0 0
        %1470 = vmatprep.subr.bf16.mxu0 0
        %1471 = vmatpush2.bf16.msra.mxu0 0
        %1472 = vmatprep.subr.bf16.mxu0 0
        %1473 = vmatpush2.bf16.msra.mxu0 0
        %1474 = vmatprep.subr.bf16.mxu0 0
        %1475 = vmatpush2.bf16.msra.mxu0 0
        %1476 = vmatprep.subr.bf16.mxu0 0
        %1477 = vmatpush2.bf16.msra.mxu0 0
        %1478 = vmatprep.subr.bf16.mxu0 0
        %1479 = vmatpush2.bf16.msra.mxu0 0
        %1480 = vmatprep.subr.bf16.mxu0 0
        %1481 = vmatpush2.bf16.msra.mxu0 0
        %1482 = vmatprep.mubr.bf16.mxu0 0
        %1483 = vmatmul.mubr.bf16.gmra.mxu0 %v1448
        %v1484 = vpop.f32.mrf.mxu0
        %v1485 = vadd.f32 0.0, %v1484
        %v1486 = vpop.f32.mrf.mxu0
        %v1487 = vpop.f32.mrf.mxu0
        %v1488 = vpop.f32.mrf.mxu0
        %1489 = vdwg.mxu0
        %1491 = vrot.lane.b32.xlu0 %v1485, 64
        %v1492 = vpop.permute.xlu0 %1491
        %v1494 = vadd.f32 %v1442, %v1492
        %v1495 = vxor.u32 %v1441, 2147483648
        %v1496 = vmul.f32 %v1495, 1.442695
        %v1497 = vpow.pop %v1496
        %v1498 = vadd.f32 %v1497, 1.0
        %v1499 = vrcp.pop %v1498
        %v1500 = vmul.f32 1.0, %v1499
        %v1501 = vxor.u32 %v1494, 2147483648
        %v1502 = vmul.f32 %v1501, 1.442695
        %v1503 = vpow.pop %v1502
        %v1504 = vadd.f32 %v1503, 1.0
        %v1505 = vrcp.pop %v1504
        %v1506 = vmul.f32 1.0, %v1505
        %v1507 = vtanh.pop %v1441
        %v1508 = vtanh.pop %v1494
        %v1509 = vmul.f32 %v1500, %v1359
        %1511 = vrot.lane.b32.xlu0 %v1507, 80
        %v1512 = vpop.permute.xlu0 %1511
        %v1514 = vmul.f32 %v1500, %v1512
        %1516 = vrot.lane.b32.xlu0 %v1514, 16
        %v1517 = vpop.permute.xlu0 %1516
        %v1519 = vadd.f32 %v1509, %v1517
        %v1520 = vmul.f32 %v1506, %v1370
        %1522 = vrot.lane.b32.xlu0 %v1508, 80
        %v1523 = vpop.permute.xlu0 %1522
        %v1525 = vmul.f32 %v1506, %v1523
        %1527 = vrot.lane.b32.xlu0 %v1525, 16
        %v1528 = vpop.permute.xlu0 %1527
        %v1530 = vadd.f32 %v1520, %v1528
        %v1531 = vtanh.pop %v1519
        %1533 = vrot.lane.b32.xlu0 %v1531, 16
        %v1534 = vpop.permute.xlu0 %1533
        %v1536 = vmul.f32 %v1500, %v1534
        %v1537 = vtanh.pop %v1530
        %1539 = vrot.lane.b32.xlu0 %v1537, 16
        %v1540 = vpop.permute.xlu0 %1539
        %v1542 = vmul.f32 %v1506, %v1540
        %1544 = vrot.lane.b32.xlu0 %v1536, 96
        %v1545 = vpop.permute.xlu0 %1544
        %1547 = vst.msk [vmem:[%s343 + $0x6] sm:$0x1] %vm585, %v1545
        %1549 = vrot.lane.b32.xlu0 %v1542, 48
        %v1550 = vpop.permute.xlu0 %1549
        %1552 = vst.msk [vmem:[%s343 + $0x1] sm:$0x1] %vm591, %v1550
        %v1553 = vld [vmem:[#allocation3 + $0x7] sm:$0x1]
        %v1554 = vpack.c.bf16 %v1536, %v1536
        %1556 = vrot.lane.b32.xlu0 %v1554, 96
        %v1557 = vpop.permute.xlu0 %1556
        %v1559 = vsel %vm436, %v1557, 0
        %1561 = vmatprep.subr.bf16.mxu0 0
        %1562 = vmatpush1.bf16.msra.mxu0 0
        %1563 = vmatprep.subr.bf16.mxu0 0
        %1564 = vmatpush1.bf16.msra.mxu0 0
        %1565 = vmatprep.subr.bf16.mxu0 0
        %1566 = vmatpush1.bf16.msra.mxu0 0
        %1567 = vmatprep.subr.bf16.mxu0 0
        %1568 = vmatpush1.bf16.msra.mxu0 0
        %1569 = vmatprep.subr.bf16.mxu0 0
        %1570 = vmatpush1.bf16.msra.mxu0 0
        %1571 = vmatprep.subr.bf16.mxu0 0
        %1572 = vmatpush1.bf16.msra.mxu0 0
        %1573 = vmatprep.subr.bf16.mxu0 0
        %1574 = vmatpush1.bf16.msra.mxu0 0
        %1575 = vmatprep.subr.bf16.mxu0 0
        %1576 = vmatpush1.bf16.msra.mxu0 %v434
        %1577 = vmatprep.subr.bf16.mxu0 0
        %1578 = vmatpush2.bf16.msra.mxu0 0
        %1579 = vmatprep.subr.bf16.mxu0 0
        %1580 = vmatpush2.bf16.msra.mxu0 0
        %1581 = vmatprep.subr.bf16.mxu0 0
        %1582 = vmatpush2.bf16.msra.mxu0 0
        %1583 = vmatprep.subr.bf16.mxu0 0
        %1584 = vmatpush2.bf16.msra.mxu0 0
        %1585 = vmatprep.subr.bf16.mxu0 0
        %1586 = vmatpush2.bf16.msra.mxu0 0
        %1587 = vmatprep.subr.bf16.mxu0 0
        %1588 = vmatpush2.bf16.msra.mxu0 0
        %1589 = vmatprep.subr.bf16.mxu0 0
        %1590 = vmatpush2.bf16.msra.mxu0 0
        %1591 = vmatprep.subr.bf16.mxu0 0
        %1592 = vmatpush2.bf16.msra.mxu0 0
        %1593 = vmatprep.mubr.bf16.mxu0 0
        %1594 = vmatmul.mubr.bf16.gmra.mxu0 %v1559
        %v1595 = vpop.f32.mrf.mxu0
        %v1596 = vadd.f32 0.0, %v1595
        %v1597 = vpop.f32.mrf.mxu0
        %v1598 = vpop.f32.mrf.mxu0
        %v1599 = vpop.f32.mrf.mxu0
        %1600 = vdwg.mxu0
        %v1601 = vadd.f32 %v1553, %v1596
        %v1602 = vld [vmem:[#allocation3] sm:$0x1]
        %v1603 = vpack.c.bf16 %v1542, %v1542
        %1605 = vrot.lane.b32.xlu0 %v1603, 32
        %v1606 = vpop.permute.xlu0 %1605
        %v1608 = vsel %vm436, %v1606, 0
        %1610 = vmatprep.subr.bf16.mxu0 0
        %1611 = vmatpush1.bf16.msra.mxu0 0
        %1612 = vmatprep.subr.bf16.mxu0 0
        %1613 = vmatpush1.bf16.msra.mxu0 0
        %1614 = vmatprep.subr.bf16.mxu0 0
        %1615 = vmatpush1.bf16.msra.mxu0 0
        %1616 = vmatprep.subr.bf16.mxu0 0
        %1617 = vmatpush1.bf16.msra.mxu0 0
        %1618 = vmatprep.subr.bf16.mxu0 0
        %1619 = vmatpush1.bf16.msra.mxu0 0
        %1620 = vmatprep.subr.bf16.mxu0 0
        %1621 = vmatpush1.bf16.msra.mxu0 0
        %1622 = vmatprep.subr.bf16.mxu0 0
        %1623 = vmatpush1.bf16.msra.mxu0 0
        %1624 = vmatprep.subr.bf16.mxu0 0
        %1625 = vmatpush1.bf16.msra.mxu0 %v486
        %1626 = vmatprep.subr.bf16.mxu0 0
        %1627 = vmatpush2.bf16.msra.mxu0 0
        %1628 = vmatprep.subr.bf16.mxu0 0
        %1629 = vmatpush2.bf16.msra.mxu0 0
        %1630 = vmatprep.subr.bf16.mxu0 0
        %1631 = vmatpush2.bf16.msra.mxu0 0
        %1632 = vmatprep.subr.bf16.mxu0 0
        %1633 = vmatpush2.bf16.msra.mxu0 0
        %1634 = vmatprep.subr.bf16.mxu0 0
        %1635 = vmatpush2.bf16.msra.mxu0 0
        %1636 = vmatprep.subr.bf16.mxu0 0
        %1637 = vmatpush2.bf16.msra.mxu0 0
        %1638 = vmatprep.subr.bf16.mxu0 0
        %1639 = vmatpush2.bf16.msra.mxu0 0
        %1640 = vmatprep.subr.bf16.mxu0 0
        %1641 = vmatpush2.bf16.msra.mxu0 0
        %1642 = vmatprep.mubr.bf16.mxu0 0
        %1643 = vmatmul.mubr.bf16.gmra.mxu0 %v1608
        %v1644 = vpop.f32.mrf.mxu0
        %v1645 = vadd.f32 0.0, %v1644
        %v1646 = vpop.f32.mrf.mxu0
        %v1647 = vpop.f32.mrf.mxu0
        %v1648 = vpop.f32.mrf.mxu0
        %1649 = vdwg.mxu0
        %1651 = vrot.lane.b32.xlu0 %v1645, 64
        %v1652 = vpop.permute.xlu0 %1651
        %v1654 = vadd.f32 %v1602, %v1652
        %v1655 = vxor.u32 %v1601, 2147483648
        %v1656 = vmul.f32 %v1655, 1.442695
        %v1657 = vpow.pop %v1656
        %v1658 = vadd.f32 %v1657, 1.0
        %v1659 = vrcp.pop %v1658
        %v1660 = vmul.f32 1.0, %v1659
        %v1661 = vxor.u32 %v1654, 2147483648
        %v1662 = vmul.f32 %v1661, 1.442695
        %v1663 = vpow.pop %v1662
        %v1664 = vadd.f32 %v1663, 1.0
        %v1665 = vrcp.pop %v1664
        %v1666 = vmul.f32 1.0, %v1665
        %v1667 = vtanh.pop %v1601
        %v1668 = vtanh.pop %v1654
        %v1669 = vmul.f32 %v1660, %v1519
        %1671 = vrot.lane.b32.xlu0 %v1667, 80
        %v1672 = vpop.permute.xlu0 %1671
        %v1674 = vmul.f32 %v1660, %v1672
        %1676 = vrot.lane.b32.xlu0 %v1674, 16
        %v1677 = vpop.permute.xlu0 %1676
        %v1679 = vadd.f32 %v1669, %v1677
        %v1680 = vmul.f32 %v1666, %v1530
        %1682 = vrot.lane.b32.xlu0 %v1668, 80
        %v1683 = vpop.permute.xlu0 %1682
        %v1685 = vmul.f32 %v1666, %v1683
        %1687 = vrot.lane.b32.xlu0 %v1685, 16
        %v1688 = vpop.permute.xlu0 %1687
        %v1690 = vadd.f32 %v1680, %v1688
        %v1691 = vtanh.pop %v1679
        %1693 = vrot.lane.b32.xlu0 %v1691, 16
        %v1694 = vpop.permute.xlu0 %1693
        %v1696 = vmul.f32 %v1660, %v1694
        %v1697 = vtanh.pop %v1690
        %1699 = vrot.lane.b32.xlu0 %v1697, 16
        %v1700 = vpop.permute.xlu0 %1699
        %v1702 = vmul.f32 %v1666, %v1700
        %1704 = vrot.lane.b32.xlu0 %v1696, 96
        %v1705 = vpop.permute.xlu0 %1704
        %1707 = vst.msk [vmem:[%s343 + $0x7] sm:$0x1] %vm585, %v1705
        %1709 = vrot.lane.b32.xlu0 %v1702, 48
        %v1710 = vpop.permute.xlu0 %1709
        %1712 = vst.msk [vmem:[%s343] sm:$0x1] %vm591, %v1710
        %v1713 = vld [vmem:[%s343] sm:$0xff]
        %v1714 = vld [vmem:[#allocation2] sm:$0xff]
        %v1715 = vadd.f32 %v1713, %v1714
        %1716 = vst.msk [vmem:[%s343] sm:$0xff] %vm380, %v1715
        %1717 = vst.msk [vmem:[#allocation2] sm:$0xff] %vm380, %v1715
        %s1718 = sand.u32 %s159, 1
        %s1719 = scalar_lea.sflag [#allocation6], %s1718
        %s1720 = sand.u32 %s159, 1
        %s1721 = smul.addr %s1720, 8
        %s1722 = scalar_lea.vmem [#allocation12], %s1721
        // Predicated region
        $region61: #{tpu_custom_call.1} parent=39 // pred_check
          %p1723 = pneg %p169
        $region62: #{tpu_custom_call.1} parent=39 // pred_check_branch
          %1725 = sbr.rel (%p1723) target = $region64
        $region63: #{tpu_custom_call.1} parent=39 // pred_region
          %s1727 = ssub.s32 128, 128
          %1728 = vsyncadd %s1719, %s1727
          %s1729 = smul.addr %s26, 128
          %s1730 = scalar_lea.hbm %s5, %s1729
          %s1732 = sshll.u32 %s1722, 4
          %s1733 = int_to_ptr.vmem [resolvable:$true] %s1732
          %1735 = dma.vmem_to_hbm [thread:$0]  %s1733, 128, %s1730, %s1719
        $region64: #{tpu_custom_call.1} parent=39 // pred_fallthru
          _
      $region40: #{tpu_custom_call.1} parent=5 // pred_fallthru
        _
      %p1736 = scmp.le.s32.totalorder 2, %s21
      // Predicated region
      $region65: #{tpu_custom_call.1} parent=5 // pred_check
        %p1737 = pneg %p1736
      $region66: #{tpu_custom_call.1} parent=5 // pred_check_branch
        %1739 = sbr.rel (%p1737) target = $region68
      $region67: #{tpu_custom_call.1} parent=5 // pred_region
        %s1740 = ssub.s32 %s21, 2
        // Predicated region
        $region69: #{tpu_custom_call.1} parent=67 // pred_check
          %p1741 = pneg %p175
        $region70: #{tpu_custom_call.1} parent=67 // pred_check_branch
          %1743 = sbr.rel (%p1741) target = $region72
        $region71: #{tpu_custom_call.1} parent=67 // pred_region
          %s1744 = sand.u32 %s160, 1
          %s1745 = scalar_lea.sflag [#allocation6], %s1744
          %s1746 = sand.u32 %s160, 1
          %s1747 = smul.addr %s1746, 8
          %s1748 = scalar_lea.vmem [#allocation12], %s1747
          %1749 = dma.done %s1745, 128
        $region72: #{tpu_custom_call.1} parent=67 // pred_fallthru
          _
      $region68: #{tpu_custom_call.1} parent=5 // pred_fallthru
        _
    $region6: #{tpu_custom_call.1} parent=1 // loop_footer
      %s25 = sadd.s32 1, %s21
    $region7: #{tpu_custom_call.1} parent=1 // loop_footer_branch
      %20 = sbr.rel target = $region3
    $region8: #{tpu_custom_call.1} parent=1 // loop_exit
      _
    %1750 = vsyncpa [#allocation5], 1
    %s1751 = scalar_lea.sflag [#allocation5], 1
    %1752 = vsyncpa %s1751, 1
    %1753 = vsyncpa [#allocation8], 1
    %s1754 = scalar_lea.sflag [#allocation8], 1
    %1755 = vsyncpa %s1754, 1
    %1756 = vsyncpa [#allocation11], 1
    %s1757 = scalar_lea.sflag [#allocation11], 1
    %1758 = vsyncpa %s1757, 1
    %1759 = vsyncpa [#allocation6], 1
    %s1760 = scalar_lea.sflag [#allocation6], 1
    %1761 = vsyncpa %s1760, 1

</llo_original>
